<compile_context>
chip_gen: v5e
topology: v5e:2x2
jax: 0.10.0
libtpu: 0.0.40
codegen_flags: <defaults>
</compile_context>

<pallas_src>
import functools

import jax
import jax.numpy as jnp
from jax import lax
from jax.experimental import pallas as pl
from jax.experimental.pallas import tpu as pltpu

# ----------------------------- configuration -----------------------------
B = 2             # batch
WORD_DIM = 32     # opt.word_dim
FILTERS = 32      # opt.r_filters_num (== word_dim, required by reshape)
KS = 3            # opt.kernel_size
U_MAX_R = 4       # opt.setNum_rev_of_user
I_MAX_R = 4       # opt.setNum_rev_of_item
REVIEW_LEN = 8    # opt.setNum_word_of_rev
SUMMARY_LEN = 6   # opt.setNum_word_of_summary
NUM_ASPECT = 3    # opt.num_aspect
ID_EMB = 16       # opt.id_emb_size
VOCAB = 50
USER_NUM = 10
ITEM_NUM = 10
POINTER_NUM = 3

assert FILTERS == WORD_DIM, "reshape (L*word_dim) requires filters == word_dim"


# ----------------------------- Pallas kernels -----------------------------

def _cnn_relu_kernel(x_ref, w_ref, b_ref, o_ref):
    """One grid step = one weight set (0: user, 1: item).

    x_ref: (1, M, ks*D)  im2col rows for every sequence using this weight set
    w_ref: (1, ks*D, F)  flattened conv weights
    b_ref: (1, 1, F)
    o_ref: (1, M, F)
    """
    o_ref[0] = jnp.maximum(
        jnp.dot(x_ref[0], w_ref[0], preferred_element_type=jnp.float32)
        + b_ref[0], 0.0)


def _pointer_kernel(u_sum_ref, i_sum_ref, u_rev_ref, i_rev_ref, asp_ref,
                    m_ref, mT_ref, gu_ref, gi_ref,
                    u_qv_w_ref, u_qv_b_ref, i_qv_w_ref, i_qv_b_ref,
                    u_fc_w_ref, u_fc_b_ref, i_fc_w_ref, i_fc_b_ref,
                    u_out_ref, i_out_ref,
                    acc_u_ref, acc_i_ref, *, L, A, D):
    """Fused pointer loop for one (batch b, pointer p) grid point.

    Grid: (B, P); P ("arbitrary") is a reduction axis accumulated in VMEM
    scratch; outputs (the final FC features) are written at p == P-1.
    """
    p = pl.program_id(1)
    last_p = pl.num_programs(1) - 1

    @pl.when(p == 0)
    def _():
        acc_u_ref[...] = jnp.zeros_like(acc_u_ref)
        acc_i_ref[...] = jnp.zeros_like(acc_i_ref)

    u_sum = u_sum_ref[0]            # (Ru, D)
    i_sum = i_sum_ref[0]            # (Ri, D)
    Ru = u_sum.shape[0]
    Ri = i_sum.shape[0]

    # ---- co-attention (max pooling), both scores produced row-oriented ----
    uM = jnp.dot(u_sum, m_ref[0], preferred_element_type=jnp.float32)        # (Ru, D)
    S = lax.dot_general(uM, i_sum, (((1,), (1,)), ((), ())),
                        preferred_element_type=jnp.float32)                  # (Ru, Ri)
    i_score = jnp.max(S, axis=0, keepdims=True)                              # (1, Ri)
    iMT = jnp.dot(i_sum, mT_ref[0], preferred_element_type=jnp.float32)      # (Ri, D)
    ST = lax.dot_general(iMT, u_sum, (((1,), (1,)), ((), ())),
                         preferred_element_type=jnp.float32)                 # (Ri, Ru)
    u_score = jnp.max(ST, axis=0, keepdims=True)                             # (1, Ru)

    # ---- gumbel-hard: one_hot(argmax(score + gumbel)), first-max tiebreak ----
    def hard_onehot(score_row, g_row, n):
        z = score_row + g_row                                   # (1, n)
        m = jnp.max(z, axis=1, keepdims=True)                   # (1, 1)
        iota = lax.broadcasted_iota(jnp.int32, (1, n), 1)
        cand = jnp.where(z == m, iota, n)
        first = jnp.min(cand, axis=1, keepdims=True)            # (1, 1) int32
        onehot = (iota == first).astype(jnp.float32)            # (1, n)
        return onehot, first

    oh_u, idx_u = hard_onehot(u_score, gu_ref[0, 0], Ru)
    oh_i, idx_i = hard_onehot(i_score, gi_ref[0, 0], Ri)

    # ---- selected summary embedding ----
    u_sum_one = jnp.dot(oh_u, u_sum, preferred_element_type=jnp.float32)     # (1, D)
    i_sum_one = jnp.dot(oh_i, i_sum, preferred_element_type=jnp.float32)     # (1, D)

    # ---- selected review words (L, D) via kron(one_hot, I_L) matmul ----
    def select_words(rev_ref, idx, r):
        col = lax.broadcasted_iota(jnp.int32, (L, r * L), 1)
        row = lax.broadcasted_iota(jnp.int32, (L, r * L), 0)
        sel = (col == idx * L + row).astype(jnp.float32)         # (L, r*L)
        return jnp.dot(sel, rev_ref[0], preferred_element_type=jnp.float32)  # (L, D)

    u_words = select_words(u_rev_ref, idx_u, Ru)
    i_words = select_words(i_rev_ref, idx_i, Ri)

    asp = asp_ref[0]                                             # (A, D)

    # ---- multi attention pooling (temperature 0.5 -> *2) ----
    def att_pool(words, sum_one, qv_w_ref, qv_b_ref):
        sum_vec = jnp.broadcast_to(sum_one, (A, D))
        qv = jnp.concatenate([asp, sum_vec], axis=1)             # (A, 2D)
        qv_now = jnp.dot(qv, qv_w_ref[...],
                         preferred_element_type=jnp.float32) + qv_b_ref[...]
        att = lax.dot_general(qv_now, words, (((1,), (1,)), ((), ())),
                              preferred_element_type=jnp.float32) * 2.0      # (A, L)
        att = att - jnp.max(att, axis=1, keepdims=True)
        e = jnp.exp(att)
        pr = e * pl.reciprocal(jnp.sum(e, axis=1, keepdims=True), approx=True)
        return jnp.dot(pr, words, preferred_element_type=jnp.float32)        # (A, D)

    acc_u_ref[...] += att_pool(u_words, u_sum_one, u_qv_w_ref, u_qv_b_ref)
    acc_i_ref[...] += att_pool(i_words, i_sum_one, i_qv_w_ref, i_qv_b_ref)

    # ---- finalize: fused u/i fc layers (Linear(A*D -> ID)) ----
    @pl.when(p == last_p)
    def _():
        acc_u = acc_u_ref[...]
        acc_i = acc_i_ref[...]
        u_fc = u_fc_b_ref[...]                                   # (1, ID)
        i_fc = i_fc_b_ref[...]
        for a in range(A):                                       # static unroll
            u_fc = u_fc + jnp.dot(acc_u[a:a + 1, :], u_fc_w_ref[a],
                                  preferred_element_type=jnp.float32)
            i_fc = i_fc + jnp.dot(acc_i[a:a + 1, :], i_fc_w_ref[a],
                                  preferred_element_type=jnp.float32)
        u_out_ref[0] = u_fc
        i_out_ref[0] = i_fc


# ----------------------------- wrappers -----------------------------

def _im2col(x, ks):
    """x: (..., L, D) -> (..., L, ks*D), 'same' padding over the sequence."""
    pad = ks // 2
    seq = x.shape[-2]
    xp = jnp.pad(x, [(0, 0)] * (x.ndim - 2) + [(pad, pad), (0, 0)])
    return jnp.concatenate([xp[..., k:k + seq, :] for k in range(ks)], axis=-1)


def cnn_encode_all(u_rev_emb, u_sum_emb, i_rev_emb, i_sum_emb, params):
    """Single pallas_call for all 4 encoder inputs (2 weight sets)."""
    Bn, Ru, L, D = u_rev_emb.shape
    Ls = u_sum_emb.shape[2]
    Ri = i_rev_emb.shape[1]
    KD = KS * D
    Fo = FILTERS

    nru, nsu = Bn * Ru * L, Bn * Ru * Ls
    nri, nsi = Bn * Ri * L, Bn * Ri * Ls
    u_rows = jnp.concatenate(
        [_im2col(u_rev_emb, KS).reshape(nru, KD),
         _im2col(u_sum_emb, KS).reshape(nsu, KD)], axis=0)
    i_rows = jnp.concatenate(
        [_im2col(i_rev_emb, KS).reshape(nri, KD),
         _im2col(i_sum_emb, KS).reshape(nsi, KD)], axis=0)

    M = max(u_rows.shape[0], i_rows.shape[0])
    M = -(-M // 8) * 8                                    # round up to sublane multiple
    u_rows = jnp.pad(u_rows, ((0, M - u_rows.shape[0]), (0, 0)))
    i_rows = jnp.pad(i_rows, ((0, M - i_rows.shape[0]), (0, 0)))

    rows = jnp.stack([u_rows, i_rows], axis=0)                               # (2, M, KD)
    w = jnp.stack([params["u_cnn_w"].reshape(KD, Fo),
                   params["i_cnn_w"].reshape(KD, Fo)], axis=0)               # (2, KD, F)
    bia = jnp.stack([params["u_cnn_b"], params["i_cnn_b"]], axis=0)          # (2, 1, F)

    out = pl.pallas_call(
        _cnn_relu_kernel,
        out_shape=jax.ShapeDtypeStruct((2, M, Fo), jnp.float32),
        grid=(2,),
        in_specs=[
            pl.BlockSpec((1, M, KD), lambda n: (n, 0, 0)),
            pl.BlockSpec((1, KD, Fo), lambda n: (n, 0, 0)),
            pl.BlockSpec((1, 1, Fo), lambda n: (n, 0, 0)),
        ],
        out_specs=pl.BlockSpec((1, M, Fo), lambda n: (n, 0, 0)),
        compiler_params=pltpu.CompilerParams(dimension_semantics=("parallel",)),
    )(rows, w, bia)

    u_out, i_out = out[0], out[1]
    u_rev_cnn = u_out[:nru].reshape(Bn, Ru, L, Fo)
    u_sum_cnn = u_out[nru:nru + nsu].reshape(Bn, Ru, Ls, Fo)
    i_rev_cnn = i_out[:nri].reshape(Bn, Ri, L, Fo)
    i_sum_cnn = i_out[nri:nri + nsi].reshape(Bn, Ri, Ls, Fo)
    return u_rev_cnn, u_sum_cnn, i_rev_cnn, i_sum_cnn


def pointer_fused(u_sum_embs, i_sum_embs, u_rev_flat, i_rev_flat,
                  item_w_aspect, coatt_M, gu, gi, params):
    Bn, Ru, D = u_sum_embs.shape
    Ri = i_sum_embs.shape[1]
    L = u_rev_flat.shape[1] // Ru
    A = item_w_aspect.shape[1]
    ID = params["u_fc_b"].shape[1]
    P = coatt_M.shape[0]

    coatt_MT = jnp.transpose(coatt_M, (0, 2, 1))
    u_fc_w = params["u_fc_wT"].reshape(A, D, ID)
    i_fc_w = params["i_fc_wT"].reshape(A, D, ID)

    kernel = functools.partial(_pointer_kernel, L=L, A=A, D=D)

    u_fc, i_fc = pl.pallas_call(
        kernel,
        out_shape=(jax.ShapeDtypeStruct((Bn, 1, ID), jnp.float32),
                   jax.ShapeDtypeStruct((Bn, 1, ID), jnp.float32)),
        grid=(Bn, P),
        in_specs=[
            pl.BlockSpec((1, Ru, D), lambda b, p: (b, 0, 0)),
            pl.BlockSpec((1, Ri, D), lambda b, p: (b, 0, 0)),
            pl.BlockSpec((1, Ru * L, D), lambda b, p: (b, 0, 0)),
            pl.BlockSpec((1, Ri * L, D), lambda b, p: (b, 0, 0)),
            pl.BlockSpec((1, A, D), lambda b, p: (b, 0, 0)),
            pl.BlockSpec((1, D, D), lambda b, p: (p, 0, 0)),
            pl.BlockSpec((1, D, D), lambda b, p: (p, 0, 0)),
            pl.BlockSpec((1, 1, 1, Ru), lambda b, p: (b, p, 0, 0)),
            pl.BlockSpec((1, 1, 1, Ri), lambda b, p: (b, p, 0, 0)),
            pl.BlockSpec((2 * D, D), lambda b, p: (0, 0)),
            pl.BlockSpec((1, D), lambda b, p: (0, 0)),
            pl.BlockSpec((2 * D, D), lambda b, p: (0, 0)),
            pl.BlockSpec((1, D), lambda b, p: (0, 0)),
            pl.BlockSpec((A, D, ID), lambda b, p: (0, 0, 0)),
            pl.BlockSpec((1, ID), lambda b, p: (0, 0)),
            pl.BlockSpec((A, D, ID), lambda b, p: (0, 0, 0)),
            pl.BlockSpec((1, ID), lambda b, p: (0, 0)),
        ],
        out_specs=(pl.BlockSpec((1, 1, ID), lambda b, p: (b, 0, 0)),
                   pl.BlockSpec((1, 1, ID), lambda b, p: (b, 0, 0))),
        scratch_shapes=[pltpu.VMEM((A, D), jnp.float32),
                        pltpu.VMEM((A, D), jnp.float32)],
        compiler_params=pltpu.CompilerParams(
            dimension_semantics=("parallel", "arbitrary")),
    )(u_sum_embs, i_sum_embs, u_rev_flat, i_rev_flat, item_w_aspect,
      coatt_M, coatt_MT, gu, gi,
      params["u_qv_wT"], params["u_qv_b"], params["i_qv_wT"], params["i_qv_b"],
      u_fc_w, params["u_fc_b"], i_fc_w, params["i_fc_b"])
    return u_fc[:, 0, :], i_fc[:, 0, :]


# ----------------------------- params & forward -----------------------------

def init_params(key):
    keys = jax.random.split(key, 20)

    def unif(k, shape, lo=-0.1, hi=0.1):
        return jax.random.uniform(k, shape, jnp.float32, lo, hi)

    xav = (6.0 / (2 * WORD_DIM)) ** 0.5
    kb = (1.0 / (KS * WORD_DIM)) ** 0.5
    return {
        "user_word_embs": unif(keys[0], (VOCAB, WORD_DIM)),
        "item_word_embs": unif(keys[1], (VOCAB, WORD_DIM)),
        "item_aspect_embs": jax.random.normal(
            keys[2], (ITEM_NUM, NUM_ASPECT * WORD_DIM), jnp.float32),
        "uid_emb": jax.random.normal(keys[3], (USER_NUM, ID_EMB), jnp.float32)
        * (2.0 / (USER_NUM + ID_EMB)) ** 0.5,
        "iid_emb": jax.random.normal(keys[4], (ITEM_NUM, ID_EMB), jnp.float32)
        * (2.0 / (ITEM_NUM + ID_EMB)) ** 0.5,
        # TODO(synk): CNN submodule definition absent from reference; assumed
        # Conv2d(1, F, (KS, word_dim), padding=(KS//2, 0)) + ReLU per-word encoder.
        "u_cnn_w": unif(keys[5], (KS, WORD_DIM, FILTERS), -kb, kb),
        "u_cnn_b": unif(keys[6], (1, FILTERS), -kb, kb),
        "i_cnn_w": unif(keys[7], (KS, WORD_DIM, FILTERS), -kb, kb),
        "i_cnn_b": unif(keys[8], (1, FILTERS), -kb, kb),
        "coatt_M": unif(keys[9], (POINTER_NUM, WORD_DIM, WORD_DIM), -xav, xav),
        "u_fc_wT": unif(keys[10], (NUM_ASPECT * WORD_DIM, ID_EMB)),
        "u_fc_b": unif(keys[11], (1, ID_EMB)),
        "i_fc_wT": unif(keys[12], (NUM_ASPECT * WORD_DIM, ID_EMB)),
        "i_fc_b": unif(keys[13], (1, ID_EMB)),
        "u_qv_wT": unif(keys[14], (2 * WORD_DIM, WORD_DIM)),
        "u_qv_b": unif(keys[15], (1, WORD_DIM)),
        "i_qv_wT": unif(keys[16], (2 * WORD_DIM, WORD_DIM)),
        "i_qv_b": unif(keys[17], (1, WORD_DIM)),
    }


def forward(params, datas, gumbel_key):
    (user_reviews, item_reviews, uids, iids, _uit, _iut, _ud, _idoc,
     user_summaries, item_summaries) = datas
    Bn = uids.shape[0]
    D, A = WORD_DIM, NUM_ASPECT

    # embedding lookups (dropout = identity in eval mode)
    u_rev_emb = params["user_word_embs"][user_reviews]      # (B, Ru, L, D)
    i_rev_emb = params["item_word_embs"][item_reviews]      # (B, Ri, L, D)
    u_sum_emb = params["user_word_embs"][user_summaries]    # (B, Ru, Ls, D)
    i_sum_emb = params["item_word_embs"][item_summaries]    # (B, Ri, Ls, D)

    u_rev_cnn, u_sum_cnn, i_rev_cnn, i_sum_cnn = cnn_encode_all(
        u_rev_emb, u_sum_emb, i_rev_emb, i_sum_emb, params)

    u_summary_embs = u_sum_cnn.mean(axis=2)                 # (B, Ru, D)
    i_summary_embs = i_sum_cnn.mean(axis=2)                 # (B, Ri, D)
    u_rev_flat = u_rev_cnn.reshape(Bn, U_MAX_R * REVIEW_LEN, FILTERS)
    i_rev_flat = i_rev_cnn.reshape(Bn, I_MAX_R * REVIEW_LEN, FILTERS)

    item_w_aspect = params["item_aspect_embs"][iids].reshape(Bn, A, D)

    ku, ki = jax.random.split(gumbel_key)
    gu = jax.random.gumbel(ku, (Bn, POINTER_NUM, 1, U_MAX_R), jnp.float32)
    gi = jax.random.gumbel(ki, (Bn, POINTER_NUM, 1, I_MAX_R), jnp.float32)

    u_fc, i_fc = pointer_fused(u_summary_embs, i_summary_embs, u_rev_flat,
                               i_rev_flat, item_w_aspect, params["coatt_M"],
                               gu, gi, params)

    u_fea_final = jnp.stack([params["uid_emb"][uids], u_fc], axis=1)   # (B, 2, id)
    i_fea_final = jnp.stack([params["iid_emb"][iids], i_fc], axis=1)
    return u_fea_final, i_fea_final


# ----------------------------- main -----------------------------

if __name__ == "__main__":
    root = jax.random.PRNGKey(0)
    k_par, k_dat, k_gum = jax.random.split(root, 3)
    params = init_params(k_par)

    dk = jax.random.split(k_dat, 6)
    user_reviews = jax.random.randint(dk[0], (B, U_MAX_R, REVIEW_LEN), 0, VOCAB, jnp.int32)
    item_reviews = jax.random.randint(dk[1], (B, I_MAX_R, REVIEW_LEN), 0, VOCAB, jnp.int32)
    uids = jax.random.randint(dk[2], (B,), 0, USER_NUM, jnp.int32)
    iids = jax.random.randint(dk[3], (B,), 0, ITEM_NUM, jnp.int32)
    user_summaries = jax.random.randint(dk[4], (B, U_MAX_R, SUMMARY_LEN), 0, VOCAB, jnp.int32)
    item_summaries = jax.random.randint(dk[5], (B, I_MAX_R, SUMMARY_LEN), 0, VOCAB, jnp.int32)
    user_item2id = jnp.zeros((B, U_MAX_R), jnp.int32)   # unused in forward
    item_user2id = jnp.zeros((B, I_MAX_R), jnp.int32)   # unused in forward
    user_doc = jnp.zeros((B, REVIEW_LEN), jnp.int32)    # unused in forward
    item_doc = jnp.zeros((B, REVIEW_LEN), jnp.int32)    # unused in forward

    datas = (user_reviews, item_reviews, uids, iids, user_item2id, item_user2id,
             user_doc, item_doc, user_summaries, item_summaries)

    u_out, i_out = jax.jit(forward)(params, datas, k_gum)
    jax.block_until_ready((u_out, i_out))
    assert u_out.shape == (B, 2, ID_EMB) and i_out.shape == (B, 2, ID_EMB)
    print("KERNEL_OK")
</pallas_src>

<mosaic_0001>
module attributes {stable_mosaic.version = 11 : i64} {
  func.func @_cnn_relu_kernel(%arg0: i32, %arg1: memref<1x112x96xf32, #tpu.memory_space<vmem>>, %arg2: memref<1x96x32xf32, #tpu.memory_space<vmem>>, %arg3: memref<1x1x32xf32, #tpu.memory_space<vmem>>, %arg4: memref<1x112x32xf32, #tpu.memory_space<vmem>>) attributes {dimension_semantics = [#tpu.dimension_semantics<parallel>], iteration_bounds = array<i64: 2>, scalar_prefetch = 0 : i64, scratch_operands = 0 : i64, tpu.core_type = #tpu.core_type<tc>, window_params = [{transform_indices = @transform_0, window_bounds = array<i64: 1, 112, 96>}, {transform_indices = @transform_1, window_bounds = array<i64: 1, 96, 32>}, {transform_indices = @transform_2, window_bounds = array<i64: 1, 1, 32>}, {transform_indices = @transform_3, window_bounds = array<i64: 1, 112, 32>}]} {
    %c0 = arith.constant 0 : index
    %c0_0 = arith.constant 0 : index
    %c0_1 = arith.constant 0 : index
    %0 = vector.load %arg1[%c0, %c0_0, %c0_1] : memref<1x112x96xf32, #tpu.memory_space<vmem>>, vector<1x112x96xf32>
    %1 = vector.shape_cast %0 : vector<1x112x96xf32> to vector<112x96xf32>
    %c0_2 = arith.constant 0 : index
    %c0_3 = arith.constant 0 : index
    %c0_4 = arith.constant 0 : index
    %2 = vector.load %arg2[%c0_2, %c0_3, %c0_4] : memref<1x96x32xf32, #tpu.memory_space<vmem>>, vector<1x96x32xf32>
    %3 = vector.shape_cast %2 : vector<1x96x32xf32> to vector<96x32xf32>
    %cst = arith.constant dense<0.000000e+00> : vector<112x32xf32>
    %4 = tpu.matmul %1, %3, %cst {dimension_numbers = #tpu.dot_dimension_numbers<[1], [0], [0], [1], [0, 0, 1, 1], [], []>} : vector<112x96xf32>, vector<96x32xf32>, vector<112x32xf32> -> vector<112x32xf32>
    %c0_5 = arith.constant 0 : index
    %c0_6 = arith.constant 0 : index
    %c0_7 = arith.constant 0 : index
    %5 = vector.load %arg3[%c0_5, %c0_6, %c0_7] : memref<1x1x32xf32, #tpu.memory_space<vmem>>, vector<1x1x32xf32>
    %6 = vector.shape_cast %5 : vector<1x1x32xf32> to vector<1x32xf32>
    %7 = vector.broadcast %6 : vector<1x32xf32> to vector<112x32xf32>
    %8 = arith.addf %4, %7 : vector<112x32xf32>
    %cst_8 = arith.constant 0.000000e+00 : f32
    %9 = vector.broadcast %cst_8 : f32 to vector<112x32xf32>
    %10 = arith.maximumf %8, %9 : vector<112x32xf32>
    %c0_9 = arith.constant 0 : index
    %c0_10 = arith.constant 0 : index
    %c0_11 = arith.constant 0 : index
    %11 = vector.load %arg4[%c0_9, %c0_10, %c0_11] : memref<1x112x32xf32, #tpu.memory_space<vmem>>, vector<1x112x32xf32>
    %12 = vector.shape_cast %11 : vector<1x112x32xf32> to vector<112x32xf32>
    %13 = vector.shape_cast %10 : vector<112x32xf32> to vector<1x112x32xf32>
    tpu.vector_store %arg4[%c0_9, %c0_10, %c0_11], %13 {strides = array<i32>} : memref<1x112x32xf32, #tpu.memory_space<vmem>>, vector<1x112x32xf32>,
    return
  }
  func.func @transform_0(%arg0: i32) -> (i32, i32, i32) {
    %c0_i32 = arith.constant 0 : i32
    %c0_i32_0 = arith.constant 0 : i32
    %c0_i32_1 = arith.constant 0 : i32
    return %arg0, %c0_i32, %c0_i32_0 : i32, i32, i32
  }
  func.func @transform_1(%arg0: i32) -> (i32, i32, i32) {
    %c0_i32 = arith.constant 0 : i32
    %c0_i32_0 = arith.constant 0 : i32
    %c0_i32_1 = arith.constant 0 : i32
    return %arg0, %c0_i32, %c0_i32_0 : i32, i32, i32
  }
  func.func @transform_2(%arg0: i32) -> (i32, i32, i32) {
    %c0_i32 = arith.constant 0 : i32
    %c0_i32_0 = arith.constant 0 : i32
    %c0_i32_1 = arith.constant 0 : i32
    return %arg0, %c0_i32, %c0_i32_0 : i32, i32, i32
  }
  func.func @transform_3(%arg0: i32) -> (i32, i32, i32) {
    %c0_i32 = arith.constant 0 : i32
    %c0_i32_0 = arith.constant 0 : i32
    %c0_i32_1 = arith.constant 0 : i32
    return %arg0, %c0_i32, %c0_i32_0 : i32, i32, i32
  }
}

module attributes {stable_mosaic.version = 11 : i64} {
  func.func @_pointer_kernel(%arg0: i32, %arg1: i32, %arg2: memref<1x4x32xf32, #tpu.memory_space<vmem>>, %arg3: memref<1x4x32xf32, #tpu.memory_space<vmem>>, %arg4: memref<1x32x32xf32, #tpu.memory_space<vmem>>, %arg5: memref<1x32x32xf32, #tpu.memory_space<vmem>>, %arg6: memref<1x3x32xf32, #tpu.memory_space<vmem>>, %arg7: memref<1x32x32xf32, #tpu.memory_space<vmem>>, %arg8: memref<1x32x32xf32, #tpu.memory_space<vmem>>, %arg9: memref<1x1x1x4xf32, #tpu.memory_space<vmem>>, %arg10: memref<1x1x1x4xf32, #tpu.memory_space<vmem>>, %arg11: memref<64x32xf32, #tpu.memory_space<vmem>>, %arg12: memref<1x32xf32, #tpu.memory_space<vmem>>, %arg13: memref<64x32xf32, #tpu.memory_space<vmem>>, %arg14: memref<1x32xf32, #tpu.memory_space<vmem>>, %arg15: memref<3x32x16xf32, #tpu.memory_space<vmem>>, %arg16: memref<1x16xf32, #tpu.memory_space<vmem>>, %arg17: memref<3x32x16xf32, #tpu.memory_space<vmem>>, %arg18: memref<1x16xf32, #tpu.memory_space<vmem>>, %arg19: memref<1x1x16xf32, #tpu.memory_space<vmem>>, %arg20: memref<1x1x16xf32, #tpu.memory_space<vmem>>, %arg21: memref<3x32xf32, #tpu.memory_space<vmem>>, %arg22: memref<3x32xf32, #tpu.memory_space<vmem>>) attributes {dimension_semantics = [#tpu.dimension_semantics<parallel>, #tpu.dimension_semantics<arbitrary>], iteration_bounds = array<i64: 2, 3>, scalar_prefetch = 0 : i64, scratch_operands = 2 : i64, tpu.core_type = #tpu.core_type<tc>, window_params = [{transform_indices = @transform_0, window_bounds = array<i64: 1, 4, 32>}, {transform_indices = @transform_1, window_bounds = array<i64: 1, 4, 32>}, {transform_indices = @transform_2, window_bounds = array<i64: 1, 32, 32>}, {transform_indices = @transform_3, window_bounds = array<i64: 1, 32, 32>}, {transform_indices = @transform_4, window_bounds = array<i64: 1, 3, 32>}, {transform_indices = @transform_5, window_bounds = array<i64: 1, 32, 32>}, {transform_indices = @transform_6, window_bounds = array<i64: 1, 32, 32>}, {transform_indices = @transform_7, window_bounds = array<i64: 1, 1, 1, 4>}, {transform_indices = @transform_8, window_bounds = array<i64: 1, 1, 1, 4>}, {pipeline_mode = #tpu.pipeline_mode<synchronous>, transform_indices = @transform_9, window_bounds = array<i64: 64, 32>}, {pipeline_mode = #tpu.pipeline_mode<synchronous>, transform_indices = @transform_10, window_bounds = array<i64: 1, 32>}, {pipeline_mode = #tpu.pipeline_mode<synchronous>, transform_indices = @transform_11, window_bounds = array<i64: 64, 32>}, {pipeline_mode = #tpu.pipeline_mode<synchronous>, transform_indices = @transform_12, window_bounds = array<i64: 1, 32>}, {pipeline_mode = #tpu.pipeline_mode<synchronous>, transform_indices = @transform_13, window_bounds = array<i64: 3, 32, 16>}, {pipeline_mode = #tpu.pipeline_mode<synchronous>, transform_indices = @transform_14, window_bounds = array<i64: 1, 16>}, {pipeline_mode = #tpu.pipeline_mode<synchronous>, transform_indices = @transform_15, window_bounds = array<i64: 3, 32, 16>}, {pipeline_mode = #tpu.pipeline_mode<synchronous>, transform_indices = @transform_16, window_bounds = array<i64: 1, 16>}, {transform_indices = @transform_17, window_bounds = array<i64: 1, 1, 16>}, {transform_indices = @transform_18, window_bounds = array<i64: 1, 1, 16>}]} {
    %c0_i32 = arith.constant 0 : i32
    %0 = arith.cmpi eq, %arg1, %c0_i32 : i32
    %1 = arith.extui %0 : i1 to i32
    %c0_i32_0 = arith.constant 0 : i32
    %2 = arith.cmpi ne, %1, %c0_i32_0 : i32
    scf.if %2 {
      %cst_73 = arith.constant 0.000000e+00 : f32
      %132 = vector.broadcast %cst_73 : f32 to vector<3x32xf32>
      %c0_74 = arith.constant 0 : index
      %c0_75 = arith.constant 0 : index
      %133 = vector.load %arg21[%c0_74, %c0_75] : memref<3x32xf32, #tpu.memory_space<vmem>>, vector<3x32xf32>
      tpu.vector_store %arg21[%c0_74, %c0_75], %132 {strides = array<i32>} : memref<3x32xf32, #tpu.memory_space<vmem>>, vector<3x32xf32>,
      %cst_76 = arith.constant 0.000000e+00 : f32
      %134 = vector.broadcast %cst_76 : f32 to vector<3x32xf32>
      %c0_77 = arith.constant 0 : index
      %c0_78 = arith.constant 0 : index
      %135 = vector.load %arg22[%c0_77, %c0_78] : memref<3x32xf32, #tpu.memory_space<vmem>>, vector<3x32xf32>
      tpu.vector_store %arg22[%c0_77, %c0_78], %134 {strides = array<i32>} : memref<3x32xf32, #tpu.memory_space<vmem>>, vector<3x32xf32>,
    } else {
    }
    %c0 = arith.constant 0 : index
    %c0_1 = arith.constant 0 : index
    %c0_2 = arith.constant 0 : index
    %3 = vector.load %arg2[%c0, %c0_1, %c0_2] : memref<1x4x32xf32, #tpu.memory_space<vmem>>, vector<1x4x32xf32>
    %4 = vector.shape_cast %3 : vector<1x4x32xf32> to vector<4x32xf32>
    %c0_3 = arith.constant 0 : index
    %c0_4 = arith.constant 0 : index
    %c0_5 = arith.constant 0 : index
    %5 = vector.load %arg3[%c0_3, %c0_4, %c0_5] : memref<1x4x32xf32, #tpu.memory_space<vmem>>, vector<1x4x32xf32>
    %6 = vector.shape_cast %5 : vector<1x4x32xf32> to vector<4x32xf32>
    %c0_6 = arith.constant 0 : index
    %c0_7 = arith.constant 0 : index
    %c0_8 = arith.constant 0 : index
    %7 = vector.load %arg7[%c0_6, %c0_7, %c0_8] : memref<1x32x32xf32, #tpu.memory_space<vmem>>, vector<1x32x32xf32>
    %8 = vector.shape_cast %7 : vector<1x32x32xf32> to vector<32x32xf32>
    %cst = arith.constant dense<0.000000e+00> : vector<4x32xf32>
    %9 = tpu.matmul %4, %8, %cst {dimension_numbers = #tpu.dot_dimension_numbers<[1], [0], [0], [1], [0, 0, 1, 1], [], []>} : vector<4x32xf32>, vector<32x32xf32>, vector<4x32xf32> -> vector<4x32xf32>
    %cst_9 = arith.constant dense<0.000000e+00> : vector<4x4xf32>
    %10 = tpu.matmul %9, %6, %cst_9 {dimension_numbers = #tpu.dot_dimension_numbers<[1], [1], [0], [0], [0, 0, 1, 0], [], []>} : vector<4x32xf32>, vector<4x32xf32>, vector<4x4xf32> -> vector<4x4xf32>
    %cst_10 = arith.constant dense<0xFF800000> : vector<4xf32>
    %11 = vector.multi_reduction <maximumf>, %10, %cst_10 [0] : vector<4x4xf32> to vector<4xf32>
    %12 = vector.shape_cast %11 : vector<4xf32> to vector<1x4xf32>
    %c0_11 = arith.constant 0 : index
    %c0_12 = arith.constant 0 : index
    %c0_13 = arith.constant 0 : index
    %13 = vector.load %arg8[%c0_11, %c0_12, %c0_13] : memref<1x32x32xf32, #tpu.memory_space<vmem>>, vector<1x32x32xf32>
    %14 = vector.shape_cast %13 : vector<1x32x32xf32> to vector<32x32xf32>
    %cst_14 = arith.constant dense<0.000000e+00> : vector<4x32xf32>
    %15 = tpu.matmul %6, %14, %cst_14 {dimension_numbers = #tpu.dot_dimension_numbers<[1], [0], [0], [1], [0, 0, 1, 1], [], []>} : vector<4x32xf32>, vector<32x32xf32>, vector<4x32xf32> -> vector<4x32xf32>
    %cst_15 = arith.constant dense<0.000000e+00> : vector<4x4xf32>
    %16 = tpu.matmul %15, %4, %cst_15 {dimension_numbers = #tpu.dot_dimension_numbers<[1], [1], [0], [0], [0, 0, 1, 0], [], []>} : vector<4x32xf32>, vector<4x32xf32>, vector<4x4xf32> -> vector<4x4xf32>
    %cst_16 = arith.constant dense<0xFF800000> : vector<4xf32>
    %17 = vector.multi_reduction <maximumf>, %16, %cst_16 [0] : vector<4x4xf32> to vector<4xf32>
    %18 = vector.shape_cast %17 : vector<4xf32> to vector<1x4xf32>
    %c0_17 = arith.constant 0 : index
    %c0_18 = arith.constant 0 : index
    %c0_19 = arith.constant 0 : index
    %c0_20 = arith.constant 0 : index
    %19 = vector.load %arg9[%c0_17, %c0_18, %c0_19, %c0_20] : memref<1x1x1x4xf32, #tpu.memory_space<vmem>>, vector<1x1x1x4xf32>
    %20 = vector.shape_cast %19 : vector<1x1x1x4xf32> to vector<1x4xf32>
    %21 = arith.addf %18, %20 : vector<1x4xf32>
    %cst_21 = arith.constant dense<0xFF800000> : vector<1xf32>
    %22 = vector.multi_reduction <maximumf>, %21, %cst_21 [1] : vector<1x4xf32> to vector<1xf32>
    %23 = vector.shape_cast %22 : vector<1xf32> to vector<1x1xf32>
    %24 = tpu.iota {dimensions = array<i32: 1>} : vector<1x4xi32>
    %25 = vector.broadcast %23 : vector<1x1xf32> to vector<1x4xf32>
    %26 = arith.cmpf oeq, %21, %25 : vector<1x4xf32>
    %c4_i32 = arith.constant 4 : i32
    %27 = vector.broadcast %c4_i32 : i32 to vector<1x4xi32>
    %28 = arith.select %26, %24, %27 : vector<1x4xi1>, vector<1x4xi32>
    %cst_22 = arith.constant dense<2147483647> : vector<1xi32>
    %29 = vector.multi_reduction <minsi>, %28, %cst_22 [1] : vector<1x4xi32> to vector<1xi32>
    %30 = vector.shape_cast %29 : vector<1xi32> to vector<1x1xi32>
    %31 = vector.broadcast %30 : vector<1x1xi32> to vector<1x4xi32>
    %32 = arith.cmpi eq, %24, %31 : vector<1x4xi32>
    %33 = arith.extui %32 : vector<1x4xi1> to vector<1x4xi32>
    %34 = arith.sitofp %33 : vector<1x4xi32> to vector<1x4xf32>
    %c0_23 = arith.constant 0 : index
    %c0_24 = arith.constant 0 : index
    %c0_25 = arith.constant 0 : index
    %c0_26 = arith.constant 0 : index
    %35 = vector.load %arg10[%c0_23, %c0_24, %c0_25, %c0_26] : memref<1x1x1x4xf32, #tpu.memory_space<vmem>>, vector<1x1x1x4xf32>
    %36 = vector.shape_cast %35 : vector<1x1x1x4xf32> to vector<1x4xf32>
    %37 = arith.addf %12, %36 : vector<1x4xf32>
    %cst_27 = arith.constant dense<0xFF800000> : vector<1xf32>
    %38 = vector.multi_reduction <maximumf>, %37, %cst_27 [1] : vector<1x4xf32> to vector<1xf32>
    %39 = vector.shape_cast %38 : vector<1xf32> to vector<1x1xf32>
    %40 = tpu.iota {dimensions = array<i32: 1>} : vector<1x4xi32>
    %41 = vector.broadcast %39 : vector<1x1xf32> to vector<1x4xf32>
    %42 = arith.cmpf oeq, %37, %41 : vector<1x4xf32>
    %c4_i32_28 = arith.constant 4 : i32
    %43 = vector.broadcast %c4_i32_28 : i32 to vector<1x4xi32>
    %44 = arith.select %42, %40, %43 : vector<1x4xi1>, vector<1x4xi32>
    %cst_29 = arith.constant dense<2147483647> : vector<1xi32>
    %45 = vector.multi_reduction <minsi>, %44, %cst_29 [1] : vector<1x4xi32> to vector<1xi32>
    %46 = vector.shape_cast %45 : vector<1xi32> to vector<1x1xi32>
    %47 = vector.broadcast %46 : vector<1x1xi32> to vector<1x4xi32>
    %48 = arith.cmpi eq, %40, %47 : vector<1x4xi32>
    %49 = arith.extui %48 : vector<1x4xi1> to vector<1x4xi32>
    %50 = arith.sitofp %49 : vector<1x4xi32> to vector<1x4xf32>
    %cst_30 = arith.constant dense<0.000000e+00> : vector<1x32xf32>
    %51 = tpu.matmul %34, %4, %cst_30 {dimension_numbers = #tpu.dot_dimension_numbers<[1], [0], [0], [1], [0, 0, 1, 1], [], []>} : vector<1x4xf32>, vector<4x32xf32>, vector<1x32xf32> -> vector<1x32xf32>
    %cst_31 = arith.constant dense<0.000000e+00> : vector<1x32xf32>
    %52 = tpu.matmul %50, %6, %cst_31 {dimension_numbers = #tpu.dot_dimension_numbers<[1], [0], [0], [1], [0, 0, 1, 1], [], []>} : vector<1x4xf32>, vector<4x32xf32>, vector<1x32xf32> -> vector<1x32xf32>
    %53 = tpu.iota {dimensions = array<i32: 1>} : vector<8x32xi32>
    %54 = tpu.iota {dimensions = array<i32: 0>} : vector<8x32xi32>
    %c8_i32 = arith.constant 8 : i32
    %55 = vector.broadcast %c8_i32 : i32 to vector<1x1xi32>
    %56 = arith.muli %30, %55 : vector<1x1xi32>
    %57 = vector.broadcast %56 : vector<1x1xi32> to vector<8x32xi32>
    %58 = arith.addi %57, %54 : vector<8x32xi32>
    %59 = arith.cmpi eq, %53, %58 : vector<8x32xi32>
    %60 = arith.extui %59 : vector<8x32xi1> to vector<8x32xi32>
    %61 = arith.sitofp %60 : vector<8x32xi32> to vector<8x32xf32>
    %c0_32 = arith.constant 0 : index
    %c0_33 = arith.constant 0 : index
    %c0_34 = arith.constant 0 : index
    %62 = vector.load %arg4[%c0_32, %c0_33, %c0_34] : memref<1x32x32xf32, #tpu.memory_space<vmem>>, vector<1x32x32xf32>
    %63 = vector.shape_cast %62 : vector<1x32x32xf32> to vector<32x32xf32>
    %cst_35 = arith.constant dense<0.000000e+00> : vector<8x32xf32>
    %64 = tpu.matmul %61, %63, %cst_35 {dimension_numbers = #tpu.dot_dimension_numbers<[1], [0], [0], [1], [0, 0, 1, 1], [], []>} : vector<8x32xf32>, vector<32x32xf32>, vector<8x32xf32> -> vector<8x32xf32>
    %65 = tpu.iota {dimensions = array<i32: 1>} : vector<8x32xi32>
    %66 = tpu.iota {dimensions = array<i32: 0>} : vector<8x32xi32>
    %c8_i32_36 = arith.constant 8 : i32
    %67 = vector.broadcast %c8_i32_36 : i32 to vector<1x1xi32>
    %68 = arith.muli %46, %67 : vector<1x1xi32>
    %69 = vector.broadcast %68 : vector<1x1xi32> to vector<8x32xi32>
    %70 = arith.addi %69, %66 : vector<8x32xi32>
    %71 = arith.cmpi eq, %65, %70 : vector<8x32xi32>
    %72 = arith.extui %71 : vector<8x32xi1> to vector<8x32xi32>
    %73 = arith.sitofp %72 : vector<8x32xi32> to vector<8x32xf32>
    %c0_37 = arith.constant 0 : index
    %c0_38 = arith.constant 0 : index
    %c0_39 = arith.constant 0 : index
    %74 = vector.load %arg5[%c0_37, %c0_38, %c0_39] : memref<1x32x32xf32, #tpu.memory_space<vmem>>, vector<1x32x32xf32>
    %75 = vector.shape_cast %74 : vector<1x32x32xf32> to vector<32x32xf32>
    %cst_40 = arith.constant dense<0.000000e+00> : vector<8x32xf32>
    %76 = tpu.matmul %73, %75, %cst_40 {dimension_numbers = #tpu.dot_dimension_numbers<[1], [0], [0], [1], [0, 0, 1, 1], [], []>} : vector<8x32xf32>, vector<32x32xf32>, vector<8x32xf32> -> vector<8x32xf32>
    %c0_41 = arith.constant 0 : index
    %c0_42 = arith.constant 0 : index
    %c0_43 = arith.constant 0 : index
    %77 = vector.load %arg6[%c0_41, %c0_42, %c0_43] : memref<1x3x32xf32, #tpu.memory_space<vmem>>, vector<1x3x32xf32>
    %78 = vector.shape_cast %77 : vector<1x3x32xf32> to vector<3x32xf32>
    %c0_44 = arith.constant 0 : index
    %c0_45 = arith.constant 0 : index
    %79 = vector.load %arg21[%c0_44, %c0_45] : memref<3x32xf32, #tpu.memory_space<vmem>>, vector<3x32xf32>
    %80 = vector.shape_cast %51 : vector<1x32xf32> to vector<1x32xf32>
    %81 = vector.broadcast %80 : vector<1x32xf32> to vector<3x32xf32>
    %82 = tpu.concatenate %78, %81 in 1 : vector<3x32xf32>, vector<3x32xf32> -> vector<3x64xf32>
    %c0_46 = arith.constant 0 : index
    %c0_47 = arith.constant 0 : index
    %83 = vector.load %arg11[%c0_46, %c0_47] : memref<64x32xf32, #tpu.memory_space<vmem>>, vector<64x32xf32>
    %cst_48 = arith.constant dense<0.000000e+00> : vector<3x32xf32>
    %84 = tpu.matmul %82, %83, %cst_48 {dimension_numbers = #tpu.dot_dimension_numbers<[1], [0], [0], [1], [0, 0, 1, 1], [], []>} : vector<3x64xf32>, vector<64x32xf32>, vector<3x32xf32> -> vector<3x32xf32>
    %c0_49 = arith.constant 0 : index
    %c0_50 = arith.constant 0 : index
    %85 = vector.load %arg12[%c0_49, %c0_50] : memref<1x32xf32, #tpu.memory_space<vmem>>, vector<1x32xf32>
    %86 = vector.broadcast %85 : vector<1x32xf32> to vector<3x32xf32>
    %87 = arith.addf %84, %86 : vector<3x32xf32>
    %cst_51 = arith.constant dense<0.000000e+00> : vector<3x8xf32>
    %88 = tpu.matmul %87, %64, %cst_51 {dimension_numbers = #tpu.dot_dimension_numbers<[1], [1], [0], [0], [0, 0, 1, 0], [], []>} : vector<3x32xf32>, vector<8x32xf32>, vector<3x8xf32> -> vector<3x8xf32>
    %cst_52 = arith.constant 2.000000e+00 : f32
    %89 = vector.broadcast %cst_52 : f32 to vector<3x8xf32>
    %90 = arith.mulf %88, %89 : vector<3x8xf32>
    %cst_53 = arith.constant dense<0xFF800000> : vector<3xf32>
    %91 = vector.multi_reduction <maximumf>, %90, %cst_53 [1] : vector<3x8xf32> to vector<3xf32>
    %92 = vector.shape_cast %91 : vector<3xf32> to vector<3x1xf32>
    %93 = vector.broadcast %92 : vector<3x1xf32> to vector<3x8xf32>
    %94 = arith.subf %90, %93 : vector<3x8xf32>
    %95 = math.exp %94 : vector<3x8xf32>
    %cst_54 = arith.constant dense<0.000000e+00> : vector<3xf32>
    %96 = vector.multi_reduction <add>, %95, %cst_54 [1] : vector<3x8xf32> to vector<3xf32>
    %97 = vector.shape_cast %96 : vector<3xf32> to vector<3x1xf32>
    %98 = tpu.reciprocal %97 {approx = true} : vector<3x1xf32> -> vector<3x1xf32>
    %99 = vector.broadcast %98 : vector<3x1xf32> to vector<3x8xf32>
    %100 = arith.mulf %95, %99 : vector<3x8xf32>
    %cst_55 = arith.constant dense<0.000000e+00> : vector<3x32xf32>
    %101 = tpu.matmul %100, %64, %cst_55 {dimension_numbers = #tpu.dot_dimension_numbers<[1], [0], [0], [1], [0, 0, 1, 1], [], []>} : vector<3x8xf32>, vector<8x32xf32>, vector<3x32xf32> -> vector<3x32xf32>
    %102 = arith.addf %79, %101 : vector<3x32xf32>
    %c0_56 = arith.constant 0 : index
    %c0_57 = arith.constant 0 : index
    %103 = vector.load %arg21[%c0_56, %c0_57] : memref<3x32xf32, #tpu.memory_space<vmem>>, vector<3x32xf32>
    tpu.vector_store %arg21[%c0_56, %c0_57], %102 {strides = array<i32>} : memref<3x32xf32, #tpu.memory_space<vmem>>, vector<3x32xf32>,
    %c0_58 = arith.constant 0 : index
    %c0_59 = arith.constant 0 : index
    %104 = vector.load %arg22[%c0_58, %c0_59] : memref<3x32xf32, #tpu.memory_space<vmem>>, vector<3x32xf32>
    %105 = vector.shape_cast %52 : vector<1x32xf32> to vector<1x32xf32>
    %106 = vector.broadcast %105 : vector<1x32xf32> to vector<3x32xf32>
    %107 = tpu.concatenate %78, %106 in 1 : vector<3x32xf32>, vector<3x32xf32> -> vector<3x64xf32>
    %c0_60 = arith.constant 0 : index
    %c0_61 = arith.constant 0 : index
    %108 = vector.load %arg13[%c0_60, %c0_61] : memref<64x32xf32, #tpu.memory_space<vmem>>, vector<64x32xf32>
    %cst_62 = arith.constant dense<0.000000e+00> : vector<3x32xf32>
    %109 = tpu.matmul %107, %108, %cst_62 {dimension_numbers = #tpu.dot_dimension_numbers<[1], [0], [0], [1], [0, 0, 1, 1], [], []>} : vector<3x64xf32>, vector<64x32xf32>, vector<3x32xf32> -> vector<3x32xf32>
    %c0_63 = arith.constant 0 : index
    %c0_64 = arith.constant 0 : index
    %110 = vector.load %arg14[%c0_63, %c0_64] : memref<1x32xf32, #tpu.memory_space<vmem>>, vector<1x32xf32>
    %111 = vector.broadcast %110 : vector<1x32xf32> to vector<3x32xf32>
    %112 = arith.addf %109, %111 : vector<3x32xf32>
    %cst_65 = arith.constant dense<0.000000e+00> : vector<3x8xf32>
    %113 = tpu.matmul %112, %76, %cst_65 {dimension_numbers = #tpu.dot_dimension_numbers<[1], [1], [0], [0], [0, 0, 1, 0], [], []>} : vector<3x32xf32>, vector<8x32xf32>, vector<3x8xf32> -> vector<3x8xf32>
    %cst_66 = arith.constant 2.000000e+00 : f32
    %114 = vector.broadcast %cst_66 : f32 to vector<3x8xf32>
    %115 = arith.mulf %113, %114 : vector<3x8xf32>
    %cst_67 = arith.constant dense<0xFF800000> : vector<3xf32>
    %116 = vector.multi_reduction <maximumf>, %115, %cst_67 [1] : vector<3x8xf32> to vector<3xf32>
    %117 = vector.shape_cast %116 : vector<3xf32> to vector<3x1xf32>
    %118 = vector.broadcast %117 : vector<3x1xf32> to vector<3x8xf32>
    %119 = arith.subf %115, %118 : vector<3x8xf32>
    %120 = math.exp %119 : vector<3x8xf32>
    %cst_68 = arith.constant dense<0.000000e+00> : vector<3xf32>
    %121 = vector.multi_reduction <add>, %120, %cst_68 [1] : vector<3x8xf32> to vector<3xf32>
    %122 = vector.shape_cast %121 : vector<3xf32> to vector<3x1xf32>
    %123 = tpu.reciprocal %122 {approx = true} : vector<3x1xf32> -> vector<3x1xf32>
    %124 = vector.broadcast %123 : vector<3x1xf32> to vector<3x8xf32>
    %125 = arith.mulf %120, %124 : vector<3x8xf32>
    %cst_69 = arith.constant dense<0.000000e+00> : vector<3x32xf32>
    %126 = tpu.matmul %125, %76, %cst_69 {dimension_numbers = #tpu.dot_dimension_numbers<[1], [0], [0], [1], [0, 0, 1, 1], [], []>} : vector<3x8xf32>, vector<8x32xf32>, vector<3x32xf32> -> vector<3x32xf32>
    %127 = arith.addf %104, %126 : vector<3x32xf32>
    %c0_70 = arith.constant 0 : index
    %c0_71 = arith.constant 0 : index
    %128 = vector.load %arg22[%c0_70, %c0_71] : memref<3x32xf32, #tpu.memory_space<vmem>>, vector<3x32xf32>
    tpu.vector_store %arg22[%c0_70, %c0_71], %127 {strides = array<i32>} : memref<3x32xf32, #tpu.memory_space<vmem>>, vector<3x32xf32>,
    %c2_i32 = arith.constant 2 : i32
    %129 = arith.cmpi eq, %arg1, %c2_i32 : i32
    %130 = arith.extui %129 : i1 to i32
    %c0_i32_72 = arith.constant 0 : i32
    %131 = arith.cmpi ne, %130, %c0_i32_72 : i32
    scf.if %131 {
      %c0_73 = arith.constant 0 : index
      %c0_74 = arith.constant 0 : index
      %132 = vector.load %arg21[%c0_73, %c0_74] : memref<3x32xf32, #tpu.memory_space<vmem>>, vector<3x32xf32>
      %c0_75 = arith.constant 0 : index
      %c0_76 = arith.constant 0 : index
      %133 = vector.load %arg22[%c0_75, %c0_76] : memref<3x32xf32, #tpu.memory_space<vmem>>, vector<3x32xf32>
      %c0_77 = arith.constant 0 : index
      %c0_78 = arith.constant 0 : index
      %134 = vector.load %arg16[%c0_77, %c0_78] : memref<1x16xf32, #tpu.memory_space<vmem>>, vector<1x16xf32>
      %c0_79 = arith.constant 0 : index
      %c0_80 = arith.constant 0 : index
      %135 = vector.load %arg18[%c0_79, %c0_80] : memref<1x16xf32, #tpu.memory_space<vmem>>, vector<1x16xf32>
      %136 = vector.extract_strided_slice %132 {offsets = [0, 0], sizes = [1, 32], strides = [1, 1]} : vector<3x32xf32> to vector<1x32xf32>
      %c0_81 = arith.constant 0 : index
      %c0_82 = arith.constant 0 : index
      %c0_83 = arith.constant 0 : index
      %137 = vector.load %arg15[%c0_81, %c0_82, %c0_83] : memref<3x32x16xf32, #tpu.memory_space<vmem>>, vector<1x32x16xf32>
      %138 = vector.shape_cast %137 : vector<1x32x16xf32> to vector<32x16xf32>
      %cst_84 = arith.constant dense<0.000000e+00> : vector<1x16xf32>
      %139 = tpu.matmul %136, %138, %cst_84 {dimension_numbers = #tpu.dot_dimension_numbers<[1], [0], [0], [1], [0, 0, 1, 1], [], []>} : vector<1x32xf32>, vector<32x16xf32>, vector<1x16xf32> -> vector<1x16xf32>
      %140 = arith.addf %134, %139 : vector<1x16xf32>
      %141 = vector.extract_strided_slice %133 {offsets = [0, 0], sizes = [1, 32], strides = [1, 1]} : vector<3x32xf32> to vector<1x32xf32>
      %c0_85 = arith.constant 0 : index
      %c0_86 = arith.constant 0 : index
      %c0_87 = arith.constant 0 : index
      %142 = vector.load %arg17[%c0_85, %c0_86, %c0_87] : memref<3x32x16xf32, #tpu.memory_space<vmem>>, vector<1x32x16xf32>
      %143 = vector.shape_cast %142 : vector<1x32x16xf32> to vector<32x16xf32>
      %cst_88 = arith.constant dense<0.000000e+00> : vector<1x16xf32>
      %144 = tpu.matmul %141, %143, %cst_88 {dimension_numbers = #tpu.dot_dimension_numbers<[1], [0], [0], [1], [0, 0, 1, 1], [], []>} : vector<1x32xf32>, vector<32x16xf32>, vector<1x16xf32> -> vector<1x16xf32>
      %145 = arith.addf %135, %144 : vector<1x16xf32>
      %146 = vector.extract_strided_slice %132 {offsets = [1, 0], sizes = [1, 32], strides = [1, 1]} : vector<3x32xf32> to vector<1x32xf32>
      %c1 = arith.constant 1 : index
      %c0_89 = arith.constant 0 : index
      %c0_90 = arith.constant 0 : index
      %147 = vector.load %arg15[%c1, %c0_89, %c0_90] : memref<3x32x16xf32, #tpu.memory_space<vmem>>, vector<1x32x16xf32>
      %148 = vector.shape_cast %147 : vector<1x32x16xf32> to vector<32x16xf32>
      %cst_91 = arith.constant dense<0.000000e+00> : vector<1x16xf32>
      %149 = tpu.matmul %146, %148, %cst_91 {dimension_numbers = #tpu.dot_dimension_numbers<[1], [0], [0], [1], [0, 0, 1, 1], [], []>} : vector<1x32xf32>, vector<32x16xf32>, vector<1x16xf32> -> vector<1x16xf32>
      %150 = arith.addf %140, %149 : vector<1x16xf32>
      %151 = vector.extract_strided_slice %133 {offsets = [1, 0], sizes = [1, 32], strides = [1, 1]} : vector<3x32xf32> to vector<1x32xf32>
      %c1_92 = arith.constant 1 : index
      %c0_93 = arith.constant 0 : index
      %c0_94 = arith.constant 0 : index
      %152 = vector.load %arg17[%c1_92, %c0_93, %c0_94] : memref<3x32x16xf32, #tpu.memory_space<vmem>>, vector<1x32x16xf32>
      %153 = vector.shape_cast %152 : vector<1x32x16xf32> to vector<32x16xf32>
      %cst_95 = arith.constant dense<0.000000e+00> : vector<1x16xf32>
      %154 = tpu.matmul %151, %153, %cst_95 {dimension_numbers = #tpu.dot_dimension_numbers<[1], [0], [0], [1], [0, 0, 1, 1], [], []>} : vector<1x32xf32>, vector<32x16xf32>, vector<1x16xf32> -> vector<1x16xf32>
      %155 = arith.addf %145, %154 : vector<1x16xf32>
      %156 = vector.extract_strided_slice %132 {offsets = [2, 0], sizes = [1, 32], strides = [1, 1]} : vector<3x32xf32> to vector<1x32xf32>
      %c2 = arith.constant 2 : index
      %c0_96 = arith.constant 0 : index
      %c0_97 = arith.constant 0 : index
      %157 = vector.load %arg15[%c2, %c0_96, %c0_97] : memref<3x32x16xf32, #tpu.memory_space<vmem>>, vector<1x32x16xf32>
      %158 = vector.shape_cast %157 : vector<1x32x16xf32> to vector<32x16xf32>
      %cst_98 = arith.constant dense<0.000000e+00> : vector<1x16xf32>
      %159 = tpu.matmul %156, %158, %cst_98 {dimension_numbers = #tpu.dot_dimension_numbers<[1], [0], [0], [1], [0, 0, 1, 1], [], []>} : vector<1x32xf32>, vector<32x16xf32>, vector<1x16xf32> -> vector<1x16xf32>
      %160 = arith.addf %150, %159 : vector<1x16xf32>
      %161 = vector.extract_strided_slice %133 {offsets = [2, 0], sizes = [1, 32], strides = [1, 1]} : vector<3x32xf32> to vector<1x32xf32>
      %c2_99 = arith.constant 2 : index
      %c0_100 = arith.constant 0 : index
      %c0_101 = arith.constant 0 : index
      %162 = vector.load %arg17[%c2_99, %c0_100, %c0_101] : memref<3x32x16xf32, #tpu.memory_space<vmem>>, vector<1x32x16xf32>
      %163 = vector.shape_cast %162 : vector<1x32x16xf32> to vector<32x16xf32>
      %cst_102 = arith.constant dense<0.000000e+00> : vector<1x16xf32>
      %164 = tpu.matmul %161, %163, %cst_102 {dimension_numbers = #tpu.dot_dimension_numbers<[1], [0], [0], [1], [0, 0, 1, 1], [], []>} : vector<1x32xf32>, vector<32x16xf32>, vector<1x16xf32> -> vector<1x16xf32>
      %165 = arith.addf %155, %164 : vector<1x16xf32>
      %c0_103 = arith.constant 0 : index
      %c0_104 = arith.constant 0 : index
      %c0_105 = arith.constant 0 : index
      %166 = vector.load %arg19[%c0_103, %c0_104, %c0_105] : memref<1x1x16xf32, #tpu.memory_space<vmem>>, vector<1x1x16xf32>
      %167 = vector.shape_cast %166 : vector<1x1x16xf32> to vector<1x16xf32>
      %168 = vector.shape_cast %160 : vector<1x16xf32> to vector<1x1x16xf32>
      tpu.vector_store %arg19[%c0_103, %c0_104, %c0_105], %168 {strides = array<i32>} : memref<1x1x16xf32, #tpu.memory_space<vmem>>, vector<1x1x16xf32>,
      %c0_106 = arith.constant 0 : index
      %c0_107 = arith.constant 0 : index
      %c0_108 = arith.constant 0 : index
      %169 = vector.load %arg20[%c0_106, %c0_107, %c0_108] : memref<1x1x16xf32, #tpu.memory_space<vmem>>, vector<1x1x16xf32>
      %170 = vector.shape_cast %169 : vector<1x1x16xf32> to vector<1x16xf32>
      %171 = vector.shape_cast %165 : vector<1x16xf32> to vector<1x1x16xf32>
      tpu.vector_store %arg20[%c0_106, %c0_107, %c0_108], %171 {strides = array<i32>} : memref<1x1x16xf32, #tpu.memory_space<vmem>>, vector<1x1x16xf32>,
    } else {
    }
    return
  }
  func.func @transform_0(%arg0: i32, %arg1: i32) -> (i32, i32, i32) {
    %c0_i32 = arith.constant 0 : i32
    %c0_i32_0 = arith.constant 0 : i32
    %c0_i32_1 = arith.constant 0 : i32
    return %arg0, %c0_i32, %c0_i32_0 : i32, i32, i32
  }
  func.func @transform_1(%arg0: i32, %arg1: i32) -> (i32, i32, i32) {
    %c0_i32 = arith.constant 0 : i32
    %c0_i32_0 = arith.constant 0 : i32
    %c0_i32_1 = arith.constant 0 : i32
    return %arg0, %c0_i32, %c0_i32_0 : i32, i32, i32
  }
  func.func @transform_2(%arg0: i32, %arg1: i32) -> (i32, i32, i32) {
    %c0_i32 = arith.constant 0 : i32
    %c0_i32_0 = arith.constant 0 : i32
    %c0_i32_1 = arith.constant 0 : i32
    return %arg0, %c0_i32, %c0_i32_0 : i32, i32, i32
  }
  func.func @transform_3(%arg0: i32, %arg1: i32) -> (i32, i32, i32) {
    %c0_i32 = arith.constant 0 : i32
    %c0_i32_0 = arith.constant 0 : i32
    %c0_i32_1 = arith.constant 0 : i32
    return %arg0, %c0_i32, %c0_i32_0 : i32, i32, i32
  }
  func.func @transform_4(%arg0: i32, %arg1: i32) -> (i32, i32, i32) {
    %c0_i32 = arith.constant 0 : i32
    %c0_i32_0 = arith.constant 0 : i32
    %c0_i32_1 = arith.constant 0 : i32
    return %arg0, %c0_i32, %c0_i32_0 : i32, i32, i32
  }
  func.func @transform_5(%arg0: i32, %arg1: i32) -> (i32, i32, i32) {
    %c0_i32 = arith.constant 0 : i32
    %c0_i32_0 = arith.constant 0 : i32
    %c0_i32_1 = arith.constant 0 : i32
    return %arg1, %c0_i32, %c0_i32_0 : i32, i32, i32
  }
  func.func @transform_6(%arg0: i32, %arg1: i32) -> (i32, i32, i32) {
    %c0_i32 = arith.constant 0 : i32
    %c0_i32_0 = arith.constant 0 : i32
    %c0_i32_1 = arith.constant 0 : i32
    return %arg1, %c0_i32, %c0_i32_0 : i32, i32, i32
  }
  func.func @transform_7(%arg0: i32, %arg1: i32) -> (i32, i32, i32, i32) {
    %c0_i32 = arith.constant 0 : i32
    %c0_i32_0 = arith.constant 0 : i32
    %c0_i32_1 = arith.constant 0 : i32
    return %arg0, %arg1, %c0_i32, %c0_i32_0 : i32, i32, i32, i32
  }
  func.func @transform_8(%arg0: i32, %arg1: i32) -> (i32, i32, i32, i32) {
    %c0_i32 = arith.constant 0 : i32
    %c0_i32_0 = arith.constant 0 : i32
    %c0_i32_1 = arith.constant 0 : i32
    return %arg0, %arg1, %c0_i32, %c0_i32_0 : i32, i32, i32, i32
  }
  func.func @transform_9(%arg0: i32, %arg1: i32) -> (i32, i32) {
    %c0_i32 = arith.constant 0 : i32
    %c0_i32_0 = arith.constant 0 : i32
    %c0_i32_1 = arith.constant 0 : i32
    return %c0_i32, %c0_i32_0 : i32, i32
  }
  func.func @transform_10(%arg0: i32, %arg1: i32) -> (i32, i32) {
    %c0_i32 = arith.constant 0 : i32
    %c0_i32_0 = arith.constant 0 : i32
    %c0_i32_1 = arith.constant 0 : i32
    return %c0_i32, %c0_i32_0 : i32, i32
  }
  func.func @transform_11(%arg0: i32, %arg1: i32) -> (i32, i32) {
    %c0_i32 = arith.constant 0 : i32
    %c0_i32_0 = arith.constant 0 : i32
    %c0_i32_1 = arith.constant 0 : i32
    return %c0_i32, %c0_i32_0 : i32, i32
  }
  func.func @transform_12(%arg0: i32, %arg1: i32) -> (i32, i32) {
    %c0_i32 = arith.constant 0 : i32
    %c0_i32_0 = arith.constant 0 : i32
    %c0_i32_1 = arith.constant 0 : i32
    return %c0_i32, %c0_i32_0 : i32, i32
  }
  func.func @transform_13(%arg0: i32, %arg1: i32) -> (i32, i32, i32) {
    %c0_i32 = arith.constant 0 : i32
    %c0_i32_0 = arith.constant 0 : i32
    %c0_i32_1 = arith.constant 0 : i32
    %c0_i32_2 = arith.constant 0 : i32
    return %c0_i32, %c0_i32_0, %c0_i32_1 : i32, i32, i32
  }
  func.func @transform_14(%arg0: i32, %arg1: i32) -> (i32, i32) {
    %c0_i32 = arith.constant 0 : i32
    %c0_i32_0 = arith.constant 0 : i32
    %c0_i32_1 = arith.constant 0 : i32
    return %c0_i32, %c0_i32_0 : i32, i32
  }
  func.func @transform_15(%arg0: i32, %arg1: i32) -> (i32, i32, i32) {
    %c0_i32 = arith.constant 0 : i32
    %c0_i32_0 = arith.constant 0 : i32
    %c0_i32_1 = arith.constant 0 : i32
    %c0_i32_2 = arith.constant 0 : i32
    return %c0_i32, %c0_i32_0, %c0_i32_1 : i32, i32, i32
  }
  func.func @transform_16(%arg0: i32, %arg1: i32) -> (i32, i32) {
    %c0_i32 = arith.constant 0 : i32
    %c0_i32_0 = arith.constant 0 : i32
    %c0_i32_1 = arith.constant 0 : i32
    return %c0_i32, %c0_i32_0 : i32, i32
  }
  func.func @transform_17(%arg0: i32, %arg1: i32) -> (i32, i32, i32) {
    %c0_i32 = arith.constant 0 : i32
    %c0_i32_0 = arith.constant 0 : i32
    %c0_i32_1 = arith.constant 0 : i32
    return %arg0, %c0_i32, %c0_i32_0 : i32, i32, i32
  }
  func.func @transform_18(%arg0: i32, %arg1: i32) -> (i32, i32, i32) {
    %c0_i32 = arith.constant 0 : i32
    %c0_i32_0 = arith.constant 0 : i32
    %c0_i32_1 = arith.constant 0 : i32
    return %arg0, %c0_i32, %c0_i32_0 : i32, i32, i32
  }
}

</mosaic_0001>

<llo_original>
// kernel: forward.2
$region0: #{forward.2}
  #allocation0 [shape = 'u32[]', space=smem, size = 0x4, offset = 0x4, fixed_abs, tag = 'smem constant byte address 0x4 - core index']
  #allocation1 [shape = 'u32[72,128]{1,0:T(1,128)}', space=vmem, size = 0x9000, scoped, tag = 'internal scratch']
  %s0 = inlined_call_operand.vmem [shape: f32[2,112,96], index: 0, kind: input, shape index: {}]
  %s1 = inlined_call_operand.vmem [shape: f32[2,96,32], index: 1, kind: input, shape index: {}]
  %s2 = inlined_call_operand.vmem [shape: f32[2,1,32], index: 2, kind: input, shape index: {}]
  %s3 = inlined_call_operand.vmem [shape: f32[2,112,32], index: 3, kind: output, shape index: {}]
  %s4 = sld [smem:[#allocation0]]
  $region45: #{forward.2} parent=0
    _
  %s6 = ssub.s32 1, %s4
  %s7 = scalar_select 0, %s6, %s4
  loop: start=0, step=1, limit=4
  $region2: #{forward.2} parent=0 // loop_pre_header
    _
  $region3: #{forward.2} parent=0 // loop_header
    %s9 = sphi 0, %s13
    %p10 = scmp.ge.s32.totalorder %s9, 4
    %s19 = sphi 0, %s21
    %s22 = sphi 0, %s19
    %s23 = sphi 0, %s22
    %s39 = sphi 0, %s23
    %s45 = sphi 0, %s47
    %s48 = sphi 0, %s45
    %s49 = sphi 0, %s48
    %s65 = sphi 0, %s49
    %s71 = sphi 0, %s73
    %s74 = sphi 0, %s71
    %s75 = sphi 0, %s74
    %s91 = sphi 0, %s75
    %s97 = sphi 0, %s99
    %s100 = sphi 0, %s97
    %s101 = sphi 0, %s100
    %s117 = sphi 0, %s101
  $region4: #{forward.2} parent=0 // loop_header_branch
    %12 = sbr.rel (%p10) target = $region8
  $region5: #{forward.2} parent=0 // loop_body
    %s14 = ssub.s32 %s9, 1
    %s15 = ssub.s32 %s9, 2
    %s16 = sadd.s32 %s9, 1
    %s17 = ssub.s32 %s9, %s16
    %p18 = scmp.eq.s32.totalorder %s17, 0
    %s20 = sadd.s32 %s19, 1
    %s21 = scalar_select %p18, %s19, %s20
    %p24 = pneg %p18
    %p25 = scmp.eq.s32.totalorder %s9, 1
    %p26 = por %p24, %p25
    %p27 = scmp.ne.s32.totalorder %s19, %s22
    %p28 = scmp.eq.s32.totalorder %s9, 0
    %p29 = por %p27, %p28
    %p30 = scmp.ne.s32.totalorder %s19, %s22
    %p31 = scmp.eq.s32.totalorder %s14, 1
    %p32 = por %p30, %p31
    %p33 = scmp.ne.s32.totalorder %s22, %s23
    %p34 = scmp.eq.s32.totalorder %s14, 0
    %p35 = por %p33, %p34
    %p36 = scmp.ne.s32.totalorder %s22, %s23
    %p37 = scmp.eq.s32.totalorder %s15, 1
    %p38 = por %p36, %p37
    %p40 = scmp.ne.s32.totalorder %s23, %s39
    %p41 = scmp.eq.s32.totalorder %s15, 0
    %p42 = por %p40, %p41
    %s43 = ssub.s32 %s9, %s16
    %p44 = scmp.eq.s32.totalorder %s43, 0
    %s46 = sadd.s32 %s45, 1
    %s47 = scalar_select %p44, %s45, %s46
    %p50 = pneg %p44
    %p51 = scmp.eq.s32.totalorder %s9, 1
    %p52 = por %p50, %p51
    %p53 = scmp.ne.s32.totalorder %s45, %s48
    %p54 = scmp.eq.s32.totalorder %s9, 0
    %p55 = por %p53, %p54
    %p56 = scmp.ne.s32.totalorder %s45, %s48
    %p57 = scmp.eq.s32.totalorder %s14, 1
    %p58 = por %p56, %p57
    %p59 = scmp.ne.s32.totalorder %s48, %s49
    %p60 = scmp.eq.s32.totalorder %s14, 0
    %p61 = por %p59, %p60
    %p62 = scmp.ne.s32.totalorder %s48, %s49
    %p63 = scmp.eq.s32.totalorder %s15, 1
    %p64 = por %p62, %p63
    %p66 = scmp.ne.s32.totalorder %s49, %s65
    %p67 = scmp.eq.s32.totalorder %s15, 0
    %p68 = por %p66, %p67
    %s69 = ssub.s32 %s9, %s16
    %p70 = scmp.eq.s32.totalorder %s69, 0
    %s72 = sadd.s32 %s71, 1
    %s73 = scalar_select %p70, %s71, %s72
    %p76 = pneg %p70
    %p77 = scmp.eq.s32.totalorder %s9, 1
    %p78 = por %p76, %p77
    %p79 = scmp.ne.s32.totalorder %s71, %s74
    %p80 = scmp.eq.s32.totalorder %s9, 0
    %p81 = por %p79, %p80
    %p82 = scmp.ne.s32.totalorder %s71, %s74
    %p83 = scmp.eq.s32.totalorder %s14, 1
    %p84 = por %p82, %p83
    %p85 = scmp.ne.s32.totalorder %s74, %s75
    %p86 = scmp.eq.s32.totalorder %s14, 0
    %p87 = por %p85, %p86
    %p88 = scmp.ne.s32.totalorder %s74, %s75
    %p89 = scmp.eq.s32.totalorder %s15, 1
    %p90 = por %p88, %p89
    %p92 = scmp.ne.s32.totalorder %s75, %s91
    %p93 = scmp.eq.s32.totalorder %s15, 0
    %p94 = por %p92, %p93
    %s95 = ssub.s32 %s9, %s16
    %p96 = scmp.eq.s32.totalorder %s95, 0
    %s98 = sadd.s32 %s97, 1
    %s99 = scalar_select %p96, %s97, %s98
    %p102 = pneg %p96
    %p103 = scmp.eq.s32.totalorder %s9, 1
    %p104 = por %p102, %p103
    %p105 = scmp.ne.s32.totalorder %s97, %s100
    %p106 = scmp.eq.s32.totalorder %s9, 0
    %p107 = por %p105, %p106
    %p108 = scmp.ne.s32.totalorder %s97, %s100
    %p109 = scmp.eq.s32.totalorder %s14, 1
    %p110 = por %p108, %p109
    %p111 = scmp.ne.s32.totalorder %s100, %s101
    %p112 = scmp.eq.s32.totalorder %s14, 0
    %p113 = por %p111, %p112
    %p114 = scmp.ne.s32.totalorder %s100, %s101
    %p115 = scmp.eq.s32.totalorder %s15, 1
    %p116 = por %p114, %p115
    %p118 = scmp.ne.s32.totalorder %s101, %s117
    %p119 = scmp.eq.s32.totalorder %s15, 0
    %p120 = por %p118, %p119
    %p121 = scmp.le.s32.totalorder 1, %s9
    %p122 = scmp.lt.s32.totalorder %s9, 3
    %p123 = pnand %p121, %p122
    %p124 = pneg %p123
    // Predicated region
    $region9: #{forward.2} parent=5 // pred_check
      _
    $region10: #{forward.2} parent=5 // pred_check_branch
      %126 = sbr.rel (%p123) target = $region12
    $region11: #{forward.2} parent=5 // pred_region
      %s127 = ssub.s32 %s9, 1
    $region12: #{forward.2} parent=5 // pred_fallthru
      _
    %p128 = scmp.lt.s32.totalorder %s9, 2
    // Predicated region
    $region13: #{forward.2} parent=5 // pred_check
      %p129 = pneg %p128
    $region14: #{forward.2} parent=5 // pred_check_branch
      %131 = sbr.rel (%p129) target = $region16
    $region15: #{forward.2} parent=5 // pred_region
      // Predicated region
      $region17: #{forward.2} parent=15 // pred_check
        %p132 = pneg %p29
      $region18: #{forward.2} parent=15 // pred_check_branch
        %134 = sbr.rel (%p132) target = $region20
      $region19: #{forward.2} parent=15 // pred_region
        %p135 = scmp.lt.s32.totalorder %s9, 1
        %s136 = scalar_select %p135, %s9, 1
        %s137 = smul.addr %s136, 14
        %s138 = smul.addr %s137, 8
        %s139 = scalar_lea.vmem %s0, %s138
      $region20: #{forward.2} parent=15 // pred_fallthru
        _
      // Predicated region
      $region21: #{forward.2} parent=15 // pred_check
        %p140 = pneg %p55
      $region22: #{forward.2} parent=15 // pred_check_branch
        %142 = sbr.rel (%p140) target = $region24
      $region23: #{forward.2} parent=15 // pred_region
        %p143 = scmp.lt.s32.totalorder %s9, 1
        %s144 = scalar_select %p143, %s9, 1
        %s145 = smul.addr %s144, 12
        %s146 = smul.addr %s145, 8
        %s147 = scalar_lea.vmem %s1, %s146
      $region24: #{forward.2} parent=15 // pred_fallthru
        _
      // Predicated region
      $region25: #{forward.2} parent=15 // pred_check
        %p148 = pneg %p81
      $region26: #{forward.2} parent=15 // pred_check_branch
        %150 = sbr.rel (%p148) target = $region28
      $region27: #{forward.2} parent=15 // pred_region
        %p151 = scmp.lt.s32.totalorder %s9, 1
        %s152 = scalar_select %p151, %s9, 1
        %s153 = scalar_lea.vmem %s2, %s152
      $region28: #{forward.2} parent=15 // pred_fallthru
        _
    $region16: #{forward.2} parent=5 // pred_fallthru
      _
    %p154 = scmp.le.s32.totalorder 1, %s9
    %p155 = scmp.lt.s32.totalorder %s9, 3
    %p156 = pnand %p154, %p155
    %p157 = pneg %p156
    // Predicated region
    $region29: #{forward.2} parent=5 // pred_check
      _
    $region30: #{forward.2} parent=5 // pred_check_branch
      %159 = sbr.rel (%p156) target = $region32
    $region31: #{forward.2} parent=5 // pred_region
      %s160 = ssub.s32 %s9, 1
      %p161 = scmp.lt.s32.totalorder %s14, 1
      %s162 = scalar_select %p161, %s14, 1
      %s163 = smul.addr %s162, 14
      %s164 = smul.addr %s163, 8
      %s165 = scalar_lea.vmem %s0, %s164
      %p166 = pneg %p35
      %p167 = pneg %p32
      %p168 = scmp.lt.s32.totalorder %s14, 1
      %s169 = scalar_select %p168, %s14, 1
      %s170 = smul.addr %s169, 12
      %s171 = smul.addr %s170, 8
      %s172 = scalar_lea.vmem %s1, %s171
      %p173 = pneg %p61
      %p174 = pneg %p58
      %p175 = scmp.lt.s32.totalorder %s14, 1
      %s176 = scalar_select %p175, %s14, 1
      %s177 = scalar_lea.vmem %s2, %s176
      %p178 = pneg %p87
      %p179 = pneg %p84
      %p180 = pneg %p113
      %p181 = pneg %p110
      %p182 = scmp.lt.s32.totalorder %s14, 1
      %s183 = scalar_select %p182, %s14, 1
      %s184 = smul.addr %s183, 14
      %s185 = smul.addr %s184, 8
      %s186 = scalar_lea.vmem %s3, %s185
      %p187 = scmp.lt.s32.totalorder %s14, 1
      %s188 = scalar_select %p187, %s14, 1
      %s189 = smul.addr %s188, 14
      %s190 = smul.addr %s189, 8
      %s191 = scalar_lea.vmem %s0, %s190
      %p192 = scmp.lt.s32.totalorder %s14, 1
      %s193 = scalar_select %p192, %s14, 1
      %s194 = smul.addr %s193, 12
      %s195 = smul.addr %s194, 8
      %s196 = scalar_lea.vmem %s1, %s195
      %p197 = scmp.lt.s32.totalorder %s14, 1
      %s198 = scalar_select %p197, %s14, 1
      %s199 = scalar_lea.vmem %s2, %s198
      %p200 = scmp.lt.s32.totalorder %s14, 1
      %s201 = scalar_select %p200, %s14, 1
      %s202 = smul.addr %s201, 14
      %s203 = smul.addr %s202, 8
      %s204 = scalar_lea.vmem %s3, %s203
      %v205 = vld [vmem:[%s191] sm:$0xff]
      %v206 = vld [vmem:[%s191 + $0x8] sm:$0xff]
      %v207 = vld [vmem:[%s191 + $0x10] sm:$0xff]
      %v208 = vld [vmem:[%s191 + $0x18] sm:$0xff]
      %v209 = vld [vmem:[%s191 + $0x20] sm:$0xff]
      %v210 = vld [vmem:[%s191 + $0x28] sm:$0xff]
      %v211 = vld [vmem:[%s191 + $0x30] sm:$0xff]
      %v212 = vld [vmem:[%s191 + $0x38] sm:$0xff]
      %v213 = vld [vmem:[%s191 + $0x40] sm:$0xff]
      %v214 = vld [vmem:[%s191 + $0x48] sm:$0xff]
      %v215 = vld [vmem:[%s191 + $0x50] sm:$0xff]
      %v216 = vld [vmem:[%s191 + $0x58] sm:$0xff]
      %v217 = vld [vmem:[%s191 + $0x60] sm:$0xff]
      %v218 = vld [vmem:[%s191 + $0x68] sm:$0xff]
      %v219 = vld [vmem:[%s196] sm:$0xff]
      %v220 = vld [vmem:[%s196 + $0x8] sm:$0xff]
      %v221 = vld [vmem:[%s196 + $0x10] sm:$0xff]
      %v222 = vld [vmem:[%s196 + $0x18] sm:$0xff]
      %v223 = vld [vmem:[%s196 + $0x20] sm:$0xff]
      %v224 = vld [vmem:[%s196 + $0x28] sm:$0xff]
      %v225 = vld [vmem:[%s196 + $0x30] sm:$0xff]
      %v226 = vld [vmem:[%s196 + $0x38] sm:$0xff]
      %v227 = vld [vmem:[%s196 + $0x40] sm:$0xff]
      %v228 = vld [vmem:[%s196 + $0x48] sm:$0xff]
      %v229 = vld [vmem:[%s196 + $0x50] sm:$0xff]
      %v230 = vld [vmem:[%s196 + $0x58] sm:$0xff]
      %v231 = vld [vmem:[%s199] sm:$0x1]
      %v233 = vperm.slane %v231, 0
      %vm235 = vcmask 785408
      %v237 = vsel %vm235, %v205, 0
      %v240 = vsel %vm235, %v206, 0
      %v243 = vsel %vm235, %v207, 0
      %v246 = vsel %vm235, %v208, 0
      %v249 = vsel %vm235, %v209, 0
      %v252 = vsel %vm235, %v210, 0
      %v255 = vsel %vm235, %v211, 0
      %v258 = vsel %vm235, %v212, 0
      %v261 = vsel %vm235, %v213, 0
      %v264 = vsel %vm235, %v214, 0
      %v267 = vsel %vm235, %v215, 0
      %v270 = vsel %vm235, %v216, 0
      %v273 = vsel %vm235, %v217, 0
      %v276 = vsel %vm235, %v218, 0
      %278 = vmatpush.msra.mxu0 0.0
      %279 = vmatpush.msra.mxu0 0.0
      %280 = vmatpush.msra.mxu0 0.0
      %281 = vmatpush.msra.mxu0 0.0
      %282 = vmatpush.msra.mxu0 %v230
      %283 = vmatpush.msra.mxu0 %v229
      %284 = vmatpush.msra.mxu0 %v228
      %285 = vmatpush.msra.mxu0 %v227
      %286 = vmatpush.msra.mxu0 %v226
      %287 = vmatpush.msra.mxu0 %v225
      %288 = vmatpush.msra.mxu0 %v224
      %289 = vmatpush.msra.mxu0 %v223
      %290 = vmatpush.msra.mxu0 %v222
      %291 = vmatpush.msra.mxu0 %v221
      %292 = vmatpush.msra.mxu0 %v220
      %293 = vmatpush.msra.mxu0 %v219
      %294 = vmatmul.f32.gmra.mxu0 %v237
      %v295 = vpop.f32.mrf.mxu0
      %v296 = vadd.f32 %v233, %v295
      %297 = vmatmul.f32.gmra.mxu0 %v240
      %v298 = vpop.f32.mrf.mxu0
      %v299 = vadd.f32 %v233, %v298
      %300 = vmatmul.f32.gmra.mxu0 %v243
      %v301 = vpop.f32.mrf.mxu0
      %v302 = vadd.f32 %v233, %v301
      %303 = vmatmul.f32.gmra.mxu0 %v246
      %v304 = vpop.f32.mrf.mxu0
      %v305 = vadd.f32 %v233, %v304
      %306 = vmatmul.f32.gmra.mxu0 %v249
      %v307 = vpop.f32.mrf.mxu0
      %v308 = vadd.f32 %v233, %v307
      %309 = vmatmul.f32.gmra.mxu0 %v252
      %v310 = vpop.f32.mrf.mxu0
      %v311 = vadd.f32 %v233, %v310
      %312 = vmatmul.f32.gmra.mxu0 %v255
      %v313 = vpop.f32.mrf.mxu0
      %v314 = vadd.f32 %v233, %v313
      %315 = vmatmul.f32.gmra.mxu0 %v258
      %v316 = vpop.f32.mrf.mxu0
      %v317 = vadd.f32 %v233, %v316
      %318 = vmatmul.f32.gmra.mxu0 %v261
      %v319 = vpop.f32.mrf.mxu0
      %v320 = vadd.f32 %v233, %v319
      %321 = vmatmul.f32.gmra.mxu0 %v264
      %v322 = vpop.f32.mrf.mxu0
      %v323 = vadd.f32 %v233, %v322
      %324 = vmatmul.f32.gmra.mxu0 %v267
      %v325 = vpop.f32.mrf.mxu0
      %v326 = vadd.f32 %v233, %v325
      %327 = vmatmul.f32.gmra.mxu0 %v270
      %v328 = vpop.f32.mrf.mxu0
      %v329 = vadd.f32 %v233, %v328
      %330 = vmatmul.f32.gmra.mxu0 %v273
      %v331 = vpop.f32.mrf.mxu0
      %v332 = vadd.f32 %v233, %v331
      %333 = vmatmul.f32.gmra.mxu0 %v276
      %v334 = vpop.f32.mrf.mxu0
      %v335 = vadd.f32 %v233, %v334
      %336 = vdwg.mxu0
      %v337 = vmax.f32 %v296, 0.0
      %v338 = vmax.f32 %v299, 0.0
      %v339 = vmax.f32 %v302, 0.0
      %v340 = vmax.f32 %v305, 0.0
      %v341 = vmax.f32 %v308, 0.0
      %v342 = vmax.f32 %v311, 0.0
      %v343 = vmax.f32 %v314, 0.0
      %v344 = vmax.f32 %v317, 0.0
      %v345 = vmax.f32 %v320, 0.0
      %v346 = vmax.f32 %v323, 0.0
      %v347 = vmax.f32 %v326, 0.0
      %v348 = vmax.f32 %v329, 0.0
      %v349 = vmax.f32 %v332, 0.0
      %v350 = vmax.f32 %v335, 0.0
      %vm351 = vcmask 261120
      %352 = vst.msk [vmem:[%s204] sm:$0xff] %vm351, %v337
      %353 = vst.msk [vmem:[%s204 + $0x8] sm:$0xff] %vm351, %v338
      %354 = vst.msk [vmem:[%s204 + $0x10] sm:$0xff] %vm351, %v339
      %355 = vst.msk [vmem:[%s204 + $0x18] sm:$0xff] %vm351, %v340
      %356 = vst.msk [vmem:[%s204 + $0x20] sm:$0xff] %vm351, %v341
      %357 = vst.msk [vmem:[%s204 + $0x28] sm:$0xff] %vm351, %v342
      %358 = vst.msk [vmem:[%s204 + $0x30] sm:$0xff] %vm351, %v343
      %359 = vst.msk [vmem:[%s204 + $0x38] sm:$0xff] %vm351, %v344
      %360 = vst.msk [vmem:[%s204 + $0x40] sm:$0xff] %vm351, %v345
      %361 = vst.msk [vmem:[%s204 + $0x48] sm:$0xff] %vm351, %v346
      %362 = vst.msk [vmem:[%s204 + $0x50] sm:$0xff] %vm351, %v347
      %363 = vst.msk [vmem:[%s204 + $0x58] sm:$0xff] %vm351, %v348
      %364 = vst.msk [vmem:[%s204 + $0x60] sm:$0xff] %vm351, %v349
      %365 = vst.msk [vmem:[%s204 + $0x68] sm:$0xff] %vm351, %v350
      %p366 = scmp.lt.s32.totalorder %s14, 1
      %s367 = scalar_select %p366, %s14, 1
      %s368 = smul.addr %s367, 14
      %s369 = smul.addr %s368, 8
      %s370 = scalar_lea.vmem %s3, %s369
      // Predicated region
      $region33: #{forward.2} parent=31 // pred_check
        %p371 = pneg %p110
      $region34: #{forward.2} parent=31 // pred_check_branch
        %373 = sbr.rel (%p371) target = $region36
      $region35: #{forward.2} parent=31 // pred_region
        _
      $region36: #{forward.2} parent=31 // pred_fallthru
        _
    $region32: #{forward.2} parent=5 // pred_fallthru
      _
    %p374 = scmp.le.s32.totalorder 2, %s9
    // Predicated region
    $region37: #{forward.2} parent=5 // pred_check
      %p375 = pneg %p374
    $region38: #{forward.2} parent=5 // pred_check_branch
      %377 = sbr.rel (%p375) target = $region40
    $region39: #{forward.2} parent=5 // pred_region
      %s378 = ssub.s32 %s9, 2
      // Predicated region
      $region41: #{forward.2} parent=39 // pred_check
        %p379 = pneg %p116
      $region42: #{forward.2} parent=39 // pred_check_branch
        %381 = sbr.rel (%p379) target = $region44
      $region43: #{forward.2} parent=39 // pred_region
        %p382 = scmp.lt.s32.totalorder %s15, 1
        %s383 = scalar_select %p382, %s15, 1
        %s384 = smul.addr %s383, 14
        %s385 = smul.addr %s384, 8
        %s386 = scalar_lea.vmem %s3, %s385
      $region44: #{forward.2} parent=39 // pred_fallthru
        _
    $region40: #{forward.2} parent=5 // pred_fallthru
      _
  $region6: #{forward.2} parent=0 // loop_footer
    %s13 = sadd.s32 1, %s9
  $region7: #{forward.2} parent=0 // loop_footer_branch
    %8 = sbr.rel target = $region3
  $region8: #{forward.2} parent=0 // loop_exit
    _

// kernel: forward.3
$region0: #{forward.3}
  #allocation0 [shape = 'u32[]', space=smem, size = 0x4, offset = 0x4, fixed_abs, tag = 'smem constant byte address 0x4 - core index']
  #allocation1 [shape = 'u32[72,128]{1,0:T(1,128)}', space=vmem, size = 0x9000, scoped, tag = 'internal scratch']
  #allocation2 [shape = 'f32[3,32]{1,0:T(4,128)}', space=vmem, size = 0x800, scoped, tag = 'scratch operand']
  #allocation3 [shape = 'f32[3,32]{1,0:T(4,128)}', space=vmem, size = 0x800, scoped, tag = 'scratch operand']
  %s0 = inlined_call_operand.vmem [shape: f32[2,4,32], index: 0, kind: input, shape index: {}]
  %s1 = inlined_call_operand.vmem [shape: f32[2,4,32], index: 1, kind: input, shape index: {}]
  %s2 = inlined_call_operand.vmem [shape: f32[2,32,32], index: 2, kind: input, shape index: {}]
  %s3 = inlined_call_operand.vmem [shape: f32[2,32,32], index: 3, kind: input, shape index: {}]
  %s4 = inlined_call_operand.vmem [shape: f32[2,3,32], index: 4, kind: input, shape index: {}]
  %s5 = inlined_call_operand.vmem [shape: f32[3,32,32], index: 5, kind: input, shape index: {}]
  %s6 = inlined_call_operand.vmem [shape: f32[3,32,32], index: 6, kind: input, shape index: {}]
  %s7 = inlined_call_operand.vmem [shape: f32[2,3,1,4], index: 7, kind: input, shape index: {}]
  %s8 = inlined_call_operand.vmem [shape: f32[2,3,1,4], index: 8, kind: input, shape index: {}]
  %s9 = inlined_call_operand.vmem [shape: f32[64,32], index: 9, kind: input, shape index: {}]
  %s10 = inlined_call_operand.vmem [shape: f32[1,32], index: 10, kind: input, shape index: {}]
  %s11 = inlined_call_operand.vmem [shape: f32[64,32], index: 11, kind: input, shape index: {}]
  %s12 = inlined_call_operand.vmem [shape: f32[1,32], index: 12, kind: input, shape index: {}]
  %s13 = inlined_call_operand.vmem [shape: f32[3,32,16], index: 13, kind: input, shape index: {}]
  %s14 = inlined_call_operand.vmem [shape: f32[1,16], index: 14, kind: input, shape index: {}]
  %s15 = inlined_call_operand.vmem [shape: f32[3,32,16], index: 15, kind: input, shape index: {}]
  %s16 = inlined_call_operand.vmem [shape: f32[1,16], index: 16, kind: input, shape index: {}]
  %s17 = inlined_call_operand.vmem [shape: f32[2,1,16], index: 17, kind: output, shape index: {0}]
  %s18 = inlined_call_operand.vmem [shape: f32[2,1,16], index: 18, kind: output, shape index: {1}]
  %19 = xla_tuple %s17, %s18
  %s20 = sld [smem:[#allocation0]]
  $region117: #{forward.3} parent=0
    _
  %s22 = ssub.s32 1, %s20
  %s23 = scalar_select 0, %s22, %s20
  loop: start=0, step=1, limit=8
  $region2: #{forward.3} parent=0 // loop_pre_header
    _
  $region3: #{forward.3} parent=0 // loop_header
    %s25 = sphi 0, %s29
    %p26 = scmp.ge.s32.totalorder %s25, 8
    %s32 = sphi 0, %s44
    %s33 = sphi 0, %s40
    %s34 = sphi 0, %s32
    %s35 = sphi 0, %s33
    %s36 = sphi 0, %s34
    %s37 = sphi 0, %s35
    %s47 = sphi 0, %s49
    %s50 = sphi 0, %s47
    %s51 = sphi 0, %s50
    %s67 = sphi 0, %s51
    %s73 = sphi 0, %s75
    %s76 = sphi 0, %s73
    %s77 = sphi 0, %s76
    %s93 = sphi 0, %s77
    %s99 = sphi 0, %s101
    %s102 = sphi 0, %s99
    %s103 = sphi 0, %s102
    %s119 = sphi 0, %s103
    %s125 = sphi 0, %s127
    %s128 = sphi 0, %s125
    %s129 = sphi 0, %s128
    %s145 = sphi 0, %s129
    %s151 = sphi 0, %s153
    %s154 = sphi 0, %s151
    %s155 = sphi 0, %s154
    %s171 = sphi 0, %s155
    %s177 = sphi 0, %s179
    %s180 = sphi 0, %s177
    %s181 = sphi 0, %s180
    %s197 = sphi 0, %s181
    %s203 = sphi 0, %s205
    %s206 = sphi 0, %s203
    %s207 = sphi 0, %s206
    %s223 = sphi 0, %s207
    %s231 = sphi 0, %s233
    %s234 = sphi 0, %s231
    %s235 = sphi 0, %s234
    %s251 = sphi 0, %s235
    %s259 = sphi 0, %s261
    %s262 = sphi 0, %s259
    %s263 = sphi 0, %s262
    %s279 = sphi 0, %s263
    %s283 = sphi 0, %s283
    %s285 = sphi 0, %s283
    %s286 = sphi 0, %s285
    %s300 = sphi 0, %s286
    %s304 = sphi 0, %s304
    %s306 = sphi 0, %s304
    %s307 = sphi 0, %s306
    %s321 = sphi 0, %s307
    %s325 = sphi 0, %s325
    %s327 = sphi 0, %s325
    %s328 = sphi 0, %s327
    %s342 = sphi 0, %s328
    %s346 = sphi 0, %s346
    %s348 = sphi 0, %s346
    %s349 = sphi 0, %s348
    %s363 = sphi 0, %s349
    %s367 = sphi 0, %s367
    %s369 = sphi 0, %s367
    %s370 = sphi 0, %s369
    %s384 = sphi 0, %s370
    %s388 = sphi 0, %s388
    %s390 = sphi 0, %s388
    %s391 = sphi 0, %s390
    %s405 = sphi 0, %s391
    %s409 = sphi 0, %s409
    %s411 = sphi 0, %s409
    %s412 = sphi 0, %s411
    %s426 = sphi 0, %s412
    %s430 = sphi 0, %s430
    %s432 = sphi 0, %s430
    %s433 = sphi 0, %s432
    %s447 = sphi 0, %s433
    %s453 = sphi 0, %s455
    %s456 = sphi 0, %s453
    %s457 = sphi 0, %s456
    %s473 = sphi 0, %s457
    %s479 = sphi 0, %s481
    %s482 = sphi 0, %s479
    %s483 = sphi 0, %s482
    %s499 = sphi 0, %s483
  $region4: #{forward.3} parent=0 // loop_header_branch
    %28 = sbr.rel (%p26) target = $region8
  $region5: #{forward.3} parent=0 // loop_body
    %s30 = ssub.s32 %s25, 1
    %s31 = ssub.s32 %s25, 2
    %s38 = sadd.s32 1, %s33
    %p39 = scmp.ge.s32.totalorder %s38, 3
    %s40 = scalar_select %p39, 0, %s38
    %s41 = sadd.s32 1, %s32
    %s42 = scalar_select %p39, %s41, %s32
    %p43 = scmp.ge.s32.totalorder %s42, 2
    %s44 = scalar_select %p43, 0, %s42
    %s45 = ssub.s32 %s32, %s44
    %p46 = scmp.eq.s32.totalorder %s45, 0
    %s48 = sadd.s32 %s47, 1
    %s49 = scalar_select %p46, %s47, %s48
    %p52 = pneg %p46
    %p53 = scmp.eq.s32.totalorder %s25, 5
    %p54 = por %p52, %p53
    %p55 = scmp.ne.s32.totalorder %s47, %s50
    %p56 = scmp.eq.s32.totalorder %s25, 0
    %p57 = por %p55, %p56
    %p58 = scmp.ne.s32.totalorder %s47, %s50
    %p59 = scmp.eq.s32.totalorder %s30, 5
    %p60 = por %p58, %p59
    %p61 = scmp.ne.s32.totalorder %s50, %s51
    %p62 = scmp.eq.s32.totalorder %s30, 0
    %p63 = por %p61, %p62
    %p64 = scmp.ne.s32.totalorder %s50, %s51
    %p65 = scmp.eq.s32.totalorder %s31, 5
    %p66 = por %p64, %p65
    %p68 = scmp.ne.s32.totalorder %s51, %s67
    %p69 = scmp.eq.s32.totalorder %s31, 0
    %p70 = por %p68, %p69
    %s71 = ssub.s32 %s32, %s44
    %p72 = scmp.eq.s32.totalorder %s71, 0
    %s74 = sadd.s32 %s73, 1
    %s75 = scalar_select %p72, %s73, %s74
    %p78 = pneg %p72
    %p79 = scmp.eq.s32.totalorder %s25, 5
    %p80 = por %p78, %p79
    %p81 = scmp.ne.s32.totalorder %s73, %s76
    %p82 = scmp.eq.s32.totalorder %s25, 0
    %p83 = por %p81, %p82
    %p84 = scmp.ne.s32.totalorder %s73, %s76
    %p85 = scmp.eq.s32.totalorder %s30, 5
    %p86 = por %p84, %p85
    %p87 = scmp.ne.s32.totalorder %s76, %s77
    %p88 = scmp.eq.s32.totalorder %s30, 0
    %p89 = por %p87, %p88
    %p90 = scmp.ne.s32.totalorder %s76, %s77
    %p91 = scmp.eq.s32.totalorder %s31, 5
    %p92 = por %p90, %p91
    %p94 = scmp.ne.s32.totalorder %s77, %s93
    %p95 = scmp.eq.s32.totalorder %s31, 0
    %p96 = por %p94, %p95
    %s97 = ssub.s32 %s32, %s44
    %p98 = scmp.eq.s32.totalorder %s97, 0
    %s100 = sadd.s32 %s99, 1
    %s101 = scalar_select %p98, %s99, %s100
    %p104 = pneg %p98
    %p105 = scmp.eq.s32.totalorder %s25, 5
    %p106 = por %p104, %p105
    %p107 = scmp.ne.s32.totalorder %s99, %s102
    %p108 = scmp.eq.s32.totalorder %s25, 0
    %p109 = por %p107, %p108
    %p110 = scmp.ne.s32.totalorder %s99, %s102
    %p111 = scmp.eq.s32.totalorder %s30, 5
    %p112 = por %p110, %p111
    %p113 = scmp.ne.s32.totalorder %s102, %s103
    %p114 = scmp.eq.s32.totalorder %s30, 0
    %p115 = por %p113, %p114
    %p116 = scmp.ne.s32.totalorder %s102, %s103
    %p117 = scmp.eq.s32.totalorder %s31, 5
    %p118 = por %p116, %p117
    %p120 = scmp.ne.s32.totalorder %s103, %s119
    %p121 = scmp.eq.s32.totalorder %s31, 0
    %p122 = por %p120, %p121
    %s123 = ssub.s32 %s32, %s44
    %p124 = scmp.eq.s32.totalorder %s123, 0
    %s126 = sadd.s32 %s125, 1
    %s127 = scalar_select %p124, %s125, %s126
    %p130 = pneg %p124
    %p131 = scmp.eq.s32.totalorder %s25, 5
    %p132 = por %p130, %p131
    %p133 = scmp.ne.s32.totalorder %s125, %s128
    %p134 = scmp.eq.s32.totalorder %s25, 0
    %p135 = por %p133, %p134
    %p136 = scmp.ne.s32.totalorder %s125, %s128
    %p137 = scmp.eq.s32.totalorder %s30, 5
    %p138 = por %p136, %p137
    %p139 = scmp.ne.s32.totalorder %s128, %s129
    %p140 = scmp.eq.s32.totalorder %s30, 0
    %p141 = por %p139, %p140
    %p142 = scmp.ne.s32.totalorder %s128, %s129
    %p143 = scmp.eq.s32.totalorder %s31, 5
    %p144 = por %p142, %p143
    %p146 = scmp.ne.s32.totalorder %s129, %s145
    %p147 = scmp.eq.s32.totalorder %s31, 0
    %p148 = por %p146, %p147
    %s149 = ssub.s32 %s32, %s44
    %p150 = scmp.eq.s32.totalorder %s149, 0
    %s152 = sadd.s32 %s151, 1
    %s153 = scalar_select %p150, %s151, %s152
    %p156 = pneg %p150
    %p157 = scmp.eq.s32.totalorder %s25, 5
    %p158 = por %p156, %p157
    %p159 = scmp.ne.s32.totalorder %s151, %s154
    %p160 = scmp.eq.s32.totalorder %s25, 0
    %p161 = por %p159, %p160
    %p162 = scmp.ne.s32.totalorder %s151, %s154
    %p163 = scmp.eq.s32.totalorder %s30, 5
    %p164 = por %p162, %p163
    %p165 = scmp.ne.s32.totalorder %s154, %s155
    %p166 = scmp.eq.s32.totalorder %s30, 0
    %p167 = por %p165, %p166
    %p168 = scmp.ne.s32.totalorder %s154, %s155
    %p169 = scmp.eq.s32.totalorder %s31, 5
    %p170 = por %p168, %p169
    %p172 = scmp.ne.s32.totalorder %s155, %s171
    %p173 = scmp.eq.s32.totalorder %s31, 0
    %p174 = por %p172, %p173
    %s175 = ssub.s32 %s33, %s40
    %p176 = scmp.eq.s32.totalorder %s175, 0
    %s178 = sadd.s32 %s177, 1
    %s179 = scalar_select %p176, %s177, %s178
    %p182 = pneg %p176
    %p183 = scmp.eq.s32.totalorder %s25, 5
    %p184 = por %p182, %p183
    %p185 = scmp.ne.s32.totalorder %s177, %s180
    %p186 = scmp.eq.s32.totalorder %s25, 0
    %p187 = por %p185, %p186
    %p188 = scmp.ne.s32.totalorder %s177, %s180
    %p189 = scmp.eq.s32.totalorder %s30, 5
    %p190 = por %p188, %p189
    %p191 = scmp.ne.s32.totalorder %s180, %s181
    %p192 = scmp.eq.s32.totalorder %s30, 0
    %p193 = por %p191, %p192
    %p194 = scmp.ne.s32.totalorder %s180, %s181
    %p195 = scmp.eq.s32.totalorder %s31, 5
    %p196 = por %p194, %p195
    %p198 = scmp.ne.s32.totalorder %s181, %s197
    %p199 = scmp.eq.s32.totalorder %s31, 0
    %p200 = por %p198, %p199
    %s201 = ssub.s32 %s33, %s40
    %p202 = scmp.eq.s32.totalorder %s201, 0
    %s204 = sadd.s32 %s203, 1
    %s205 = scalar_select %p202, %s203, %s204
    %p208 = pneg %p202
    %p209 = scmp.eq.s32.totalorder %s25, 5
    %p210 = por %p208, %p209
    %p211 = scmp.ne.s32.totalorder %s203, %s206
    %p212 = scmp.eq.s32.totalorder %s25, 0
    %p213 = por %p211, %p212
    %p214 = scmp.ne.s32.totalorder %s203, %s206
    %p215 = scmp.eq.s32.totalorder %s30, 5
    %p216 = por %p214, %p215
    %p217 = scmp.ne.s32.totalorder %s206, %s207
    %p218 = scmp.eq.s32.totalorder %s30, 0
    %p219 = por %p217, %p218
    %p220 = scmp.ne.s32.totalorder %s206, %s207
    %p221 = scmp.eq.s32.totalorder %s31, 5
    %p222 = por %p220, %p221
    %p224 = scmp.ne.s32.totalorder %s207, %s223
    %p225 = scmp.eq.s32.totalorder %s31, 0
    %p226 = por %p224, %p225
    %s227 = ssub.s32 %s32, %s44
    %s228 = ssub.s32 %s33, %s40
    %s229 = sor.u32 %s227, %s228
    %p230 = scmp.eq.s32.totalorder %s229, 0
    %s232 = sadd.s32 %s231, 1
    %s233 = scalar_select %p230, %s231, %s232
    %p236 = pneg %p230
    %p237 = scmp.eq.s32.totalorder %s25, 5
    %p238 = por %p236, %p237
    %p239 = scmp.ne.s32.totalorder %s231, %s234
    %p240 = scmp.eq.s32.totalorder %s25, 0
    %p241 = por %p239, %p240
    %p242 = scmp.ne.s32.totalorder %s231, %s234
    %p243 = scmp.eq.s32.totalorder %s30, 5
    %p244 = por %p242, %p243
    %p245 = scmp.ne.s32.totalorder %s234, %s235
    %p246 = scmp.eq.s32.totalorder %s30, 0
    %p247 = por %p245, %p246
    %p248 = scmp.ne.s32.totalorder %s234, %s235
    %p249 = scmp.eq.s32.totalorder %s31, 5
    %p250 = por %p248, %p249
    %p252 = scmp.ne.s32.totalorder %s235, %s251
    %p253 = scmp.eq.s32.totalorder %s31, 0
    %p254 = por %p252, %p253
    %s255 = ssub.s32 %s32, %s44
    %s256 = ssub.s32 %s33, %s40
    %s257 = sor.u32 %s255, %s256
    %p258 = scmp.eq.s32.totalorder %s257, 0
    %s260 = sadd.s32 %s259, 1
    %s261 = scalar_select %p258, %s259, %s260
    %p264 = pneg %p258
    %p265 = scmp.eq.s32.totalorder %s25, 5
    %p266 = por %p264, %p265
    %p267 = scmp.ne.s32.totalorder %s259, %s262
    %p268 = scmp.eq.s32.totalorder %s25, 0
    %p269 = por %p267, %p268
    %p270 = scmp.ne.s32.totalorder %s259, %s262
    %p271 = scmp.eq.s32.totalorder %s30, 5
    %p272 = por %p270, %p271
    %p273 = scmp.ne.s32.totalorder %s262, %s263
    %p274 = scmp.eq.s32.totalorder %s30, 0
    %p275 = por %p273, %p274
    %p276 = scmp.ne.s32.totalorder %s262, %s263
    %p277 = scmp.eq.s32.totalorder %s31, 5
    %p278 = por %p276, %p277
    %p280 = scmp.ne.s32.totalorder %s263, %s279
    %p281 = scmp.eq.s32.totalorder %s31, 0
    %p282 = por %p280, %p281
    %s284 = sadd.s32 %s283, 1
    %p287 = scmp.eq.s32.totalorder %s25, 5
    %p288 = scmp.ne.s32.totalorder %s283, %s285
    %p289 = scmp.eq.s32.totalorder %s25, 0
    %p290 = por %p288, %p289
    %p291 = scmp.ne.s32.totalorder %s283, %s285
    %p292 = scmp.eq.s32.totalorder %s30, 5
    %p293 = por %p291, %p292
    %p294 = scmp.ne.s32.totalorder %s285, %s286
    %p295 = scmp.eq.s32.totalorder %s30, 0
    %p296 = por %p294, %p295
    %p297 = scmp.ne.s32.totalorder %s285, %s286
    %p298 = scmp.eq.s32.totalorder %s31, 5
    %p299 = por %p297, %p298
    %p301 = scmp.ne.s32.totalorder %s286, %s300
    %p302 = scmp.eq.s32.totalorder %s31, 0
    %p303 = por %p301, %p302
    %s305 = sadd.s32 %s304, 1
    %p308 = scmp.eq.s32.totalorder %s25, 5
    %p309 = scmp.ne.s32.totalorder %s304, %s306
    %p310 = scmp.eq.s32.totalorder %s25, 0
    %p311 = por %p309, %p310
    %p312 = scmp.ne.s32.totalorder %s304, %s306
    %p313 = scmp.eq.s32.totalorder %s30, 5
    %p314 = por %p312, %p313
    %p315 = scmp.ne.s32.totalorder %s306, %s307
    %p316 = scmp.eq.s32.totalorder %s30, 0
    %p317 = por %p315, %p316
    %p318 = scmp.ne.s32.totalorder %s306, %s307
    %p319 = scmp.eq.s32.totalorder %s31, 5
    %p320 = por %p318, %p319
    %p322 = scmp.ne.s32.totalorder %s307, %s321
    %p323 = scmp.eq.s32.totalorder %s31, 0
    %p324 = por %p322, %p323
    %s326 = sadd.s32 %s325, 1
    %p329 = scmp.eq.s32.totalorder %s25, 5
    %p330 = scmp.ne.s32.totalorder %s325, %s327
    %p331 = scmp.eq.s32.totalorder %s25, 0
    %p332 = por %p330, %p331
    %p333 = scmp.ne.s32.totalorder %s325, %s327
    %p334 = scmp.eq.s32.totalorder %s30, 5
    %p335 = por %p333, %p334
    %p336 = scmp.ne.s32.totalorder %s327, %s328
    %p337 = scmp.eq.s32.totalorder %s30, 0
    %p338 = por %p336, %p337
    %p339 = scmp.ne.s32.totalorder %s327, %s328
    %p340 = scmp.eq.s32.totalorder %s31, 5
    %p341 = por %p339, %p340
    %p343 = scmp.ne.s32.totalorder %s328, %s342
    %p344 = scmp.eq.s32.totalorder %s31, 0
    %p345 = por %p343, %p344
    %s347 = sadd.s32 %s346, 1
    %p350 = scmp.eq.s32.totalorder %s25, 5
    %p351 = scmp.ne.s32.totalorder %s346, %s348
    %p352 = scmp.eq.s32.totalorder %s25, 0
    %p353 = por %p351, %p352
    %p354 = scmp.ne.s32.totalorder %s346, %s348
    %p355 = scmp.eq.s32.totalorder %s30, 5
    %p356 = por %p354, %p355
    %p357 = scmp.ne.s32.totalorder %s348, %s349
    %p358 = scmp.eq.s32.totalorder %s30, 0
    %p359 = por %p357, %p358
    %p360 = scmp.ne.s32.totalorder %s348, %s349
    %p361 = scmp.eq.s32.totalorder %s31, 5
    %p362 = por %p360, %p361
    %p364 = scmp.ne.s32.totalorder %s349, %s363
    %p365 = scmp.eq.s32.totalorder %s31, 0
    %p366 = por %p364, %p365
    %s368 = sadd.s32 %s367, 1
    %p371 = scmp.eq.s32.totalorder %s25, 5
    %p372 = scmp.ne.s32.totalorder %s367, %s369
    %p373 = scmp.eq.s32.totalorder %s25, 0
    %p374 = por %p372, %p373
    %p375 = scmp.ne.s32.totalorder %s367, %s369
    %p376 = scmp.eq.s32.totalorder %s30, 5
    %p377 = por %p375, %p376
    %p378 = scmp.ne.s32.totalorder %s369, %s370
    %p379 = scmp.eq.s32.totalorder %s30, 0
    %p380 = por %p378, %p379
    %p381 = scmp.ne.s32.totalorder %s369, %s370
    %p382 = scmp.eq.s32.totalorder %s31, 5
    %p383 = por %p381, %p382
    %p385 = scmp.ne.s32.totalorder %s370, %s384
    %p386 = scmp.eq.s32.totalorder %s31, 0
    %p387 = por %p385, %p386
    %s389 = sadd.s32 %s388, 1
    %p392 = scmp.eq.s32.totalorder %s25, 5
    %p393 = scmp.ne.s32.totalorder %s388, %s390
    %p394 = scmp.eq.s32.totalorder %s25, 0
    %p395 = por %p393, %p394
    %p396 = scmp.ne.s32.totalorder %s388, %s390
    %p397 = scmp.eq.s32.totalorder %s30, 5
    %p398 = por %p396, %p397
    %p399 = scmp.ne.s32.totalorder %s390, %s391
    %p400 = scmp.eq.s32.totalorder %s30, 0
    %p401 = por %p399, %p400
    %p402 = scmp.ne.s32.totalorder %s390, %s391
    %p403 = scmp.eq.s32.totalorder %s31, 5
    %p404 = por %p402, %p403
    %p406 = scmp.ne.s32.totalorder %s391, %s405
    %p407 = scmp.eq.s32.totalorder %s31, 0
    %p408 = por %p406, %p407
    %s410 = sadd.s32 %s409, 1
    %p413 = scmp.eq.s32.totalorder %s25, 5
    %p414 = scmp.ne.s32.totalorder %s409, %s411
    %p415 = scmp.eq.s32.totalorder %s25, 0
    %p416 = por %p414, %p415
    %p417 = scmp.ne.s32.totalorder %s409, %s411
    %p418 = scmp.eq.s32.totalorder %s30, 5
    %p419 = por %p417, %p418
    %p420 = scmp.ne.s32.totalorder %s411, %s412
    %p421 = scmp.eq.s32.totalorder %s30, 0
    %p422 = por %p420, %p421
    %p423 = scmp.ne.s32.totalorder %s411, %s412
    %p424 = scmp.eq.s32.totalorder %s31, 5
    %p425 = por %p423, %p424
    %p427 = scmp.ne.s32.totalorder %s412, %s426
    %p428 = scmp.eq.s32.totalorder %s31, 0
    %p429 = por %p427, %p428
    %s431 = sadd.s32 %s430, 1
    %p434 = scmp.eq.s32.totalorder %s25, 5
    %p435 = scmp.ne.s32.totalorder %s430, %s432
    %p436 = scmp.eq.s32.totalorder %s25, 0
    %p437 = por %p435, %p436
    %p438 = scmp.ne.s32.totalorder %s430, %s432
    %p439 = scmp.eq.s32.totalorder %s30, 5
    %p440 = por %p438, %p439
    %p441 = scmp.ne.s32.totalorder %s432, %s433
    %p442 = scmp.eq.s32.totalorder %s30, 0
    %p443 = por %p441, %p442
    %p444 = scmp.ne.s32.totalorder %s432, %s433
    %p445 = scmp.eq.s32.totalorder %s31, 5
    %p446 = por %p444, %p445
    %p448 = scmp.ne.s32.totalorder %s433, %s447
    %p449 = scmp.eq.s32.totalorder %s31, 0
    %p450 = por %p448, %p449
    %s451 = ssub.s32 %s32, %s44
    %p452 = scmp.eq.s32.totalorder %s451, 0
    %s454 = sadd.s32 %s453, 1
    %s455 = scalar_select %p452, %s453, %s454
    %p458 = pneg %p452
    %p459 = scmp.eq.s32.totalorder %s25, 5
    %p460 = por %p458, %p459
    %p461 = scmp.ne.s32.totalorder %s453, %s456
    %p462 = scmp.eq.s32.totalorder %s25, 0
    %p463 = por %p461, %p462
    %p464 = scmp.ne.s32.totalorder %s453, %s456
    %p465 = scmp.eq.s32.totalorder %s30, 5
    %p466 = por %p464, %p465
    %p467 = scmp.ne.s32.totalorder %s456, %s457
    %p468 = scmp.eq.s32.totalorder %s30, 0
    %p469 = por %p467, %p468
    %p470 = scmp.ne.s32.totalorder %s456, %s457
    %p471 = scmp.eq.s32.totalorder %s31, 5
    %p472 = por %p470, %p471
    %p474 = scmp.ne.s32.totalorder %s457, %s473
    %p475 = scmp.eq.s32.totalorder %s31, 0
    %p476 = por %p474, %p475
    %s477 = ssub.s32 %s32, %s44
    %p478 = scmp.eq.s32.totalorder %s477, 0
    %s480 = sadd.s32 %s479, 1
    %s481 = scalar_select %p478, %s479, %s480
    %p484 = pneg %p478
    %p485 = scmp.eq.s32.totalorder %s25, 5
    %p486 = por %p484, %p485
    %p487 = scmp.ne.s32.totalorder %s479, %s482
    %p488 = scmp.eq.s32.totalorder %s25, 0
    %p489 = por %p487, %p488
    %p490 = scmp.ne.s32.totalorder %s479, %s482
    %p491 = scmp.eq.s32.totalorder %s30, 5
    %p492 = por %p490, %p491
    %p493 = scmp.ne.s32.totalorder %s482, %s483
    %p494 = scmp.eq.s32.totalorder %s30, 0
    %p495 = por %p493, %p494
    %p496 = scmp.ne.s32.totalorder %s482, %s483
    %p497 = scmp.eq.s32.totalorder %s31, 5
    %p498 = por %p496, %p497
    %p500 = scmp.ne.s32.totalorder %s483, %s499
    %p501 = scmp.eq.s32.totalorder %s31, 0
    %p502 = por %p500, %p501
    %p503 = scmp.le.s32.totalorder 1, %s25
    %p504 = scmp.lt.s32.totalorder %s25, 7
    %p505 = pnand %p503, %p504
    %p506 = pneg %p505
    // Predicated region
    $region9: #{forward.3} parent=5 // pred_check
      _
    $region10: #{forward.3} parent=5 // pred_check_branch
      %508 = sbr.rel (%p505) target = $region12
    $region11: #{forward.3} parent=5 // pred_region
      %s509 = ssub.s32 %s25, 1
      // Predicated region
      $region13: #{forward.3} parent=11 // pred_check
        %p510 = pneg %p296
      $region14: #{forward.3} parent=11 // pred_check_branch
        %512 = sbr.rel (%p510) target = $region16
      $region15: #{forward.3} parent=11 // pred_region
        _
      $region16: #{forward.3} parent=11 // pred_fallthru
        _
      // Predicated region
      $region17: #{forward.3} parent=11 // pred_check
        %p513 = pneg %p317
      $region18: #{forward.3} parent=11 // pred_check_branch
        %515 = sbr.rel (%p513) target = $region20
      $region19: #{forward.3} parent=11 // pred_region
        _
      $region20: #{forward.3} parent=11 // pred_fallthru
        _
      // Predicated region
      $region21: #{forward.3} parent=11 // pred_check
        %p516 = pneg %p338
      $region22: #{forward.3} parent=11 // pred_check_branch
        %518 = sbr.rel (%p516) target = $region24
      $region23: #{forward.3} parent=11 // pred_region
        _
      $region24: #{forward.3} parent=11 // pred_fallthru
        _
      // Predicated region
      $region25: #{forward.3} parent=11 // pred_check
        %p519 = pneg %p359
      $region26: #{forward.3} parent=11 // pred_check_branch
        %521 = sbr.rel (%p519) target = $region28
      $region27: #{forward.3} parent=11 // pred_region
        _
      $region28: #{forward.3} parent=11 // pred_fallthru
        _
      // Predicated region
      $region29: #{forward.3} parent=11 // pred_check
        %p522 = pneg %p380
      $region30: #{forward.3} parent=11 // pred_check_branch
        %524 = sbr.rel (%p522) target = $region32
      $region31: #{forward.3} parent=11 // pred_region
        _
      $region32: #{forward.3} parent=11 // pred_fallthru
        _
      // Predicated region
      $region33: #{forward.3} parent=11 // pred_check
        %p525 = pneg %p401
      $region34: #{forward.3} parent=11 // pred_check_branch
        %527 = sbr.rel (%p525) target = $region36
      $region35: #{forward.3} parent=11 // pred_region
        _
      $region36: #{forward.3} parent=11 // pred_fallthru
        _
      // Predicated region
      $region37: #{forward.3} parent=11 // pred_check
        %p528 = pneg %p422
      $region38: #{forward.3} parent=11 // pred_check_branch
        %530 = sbr.rel (%p528) target = $region40
      $region39: #{forward.3} parent=11 // pred_region
        _
      $region40: #{forward.3} parent=11 // pred_fallthru
        _
      // Predicated region
      $region41: #{forward.3} parent=11 // pred_check
        %p531 = pneg %p443
      $region42: #{forward.3} parent=11 // pred_check_branch
        %533 = sbr.rel (%p531) target = $region44
      $region43: #{forward.3} parent=11 // pred_region
        _
      $region44: #{forward.3} parent=11 // pred_fallthru
        _
    $region12: #{forward.3} parent=5 // pred_fallthru
      _
    %p534 = scmp.lt.s32.totalorder %s25, 6
    // Predicated region
    $region45: #{forward.3} parent=5 // pred_check
      %p535 = pneg %p534
    $region46: #{forward.3} parent=5 // pred_check_branch
      %537 = sbr.rel (%p535) target = $region48
    $region47: #{forward.3} parent=5 // pred_region
      // Predicated region
      $region49: #{forward.3} parent=47 // pred_check
        %p538 = pneg %p57
      $region50: #{forward.3} parent=47 // pred_check_branch
        %540 = sbr.rel (%p538) target = $region52
      $region51: #{forward.3} parent=47 // pred_region
        %p541 = scmp.lt.s32.totalorder %s32, 1
        %s542 = scalar_select %p541, %s32, 1
        %s543 = smul.addr %s542, 4
        %s544 = scalar_lea.vmem %s0, %s543
      $region52: #{forward.3} parent=47 // pred_fallthru
        _
      // Predicated region
      $region53: #{forward.3} parent=47 // pred_check
        %p545 = pneg %p83
      $region54: #{forward.3} parent=47 // pred_check_branch
        %547 = sbr.rel (%p545) target = $region56
      $region55: #{forward.3} parent=47 // pred_region
        %p548 = scmp.lt.s32.totalorder %s32, 1
        %s549 = scalar_select %p548, %s32, 1
        %s550 = smul.addr %s549, 4
        %s551 = scalar_lea.vmem %s1, %s550
      $region56: #{forward.3} parent=47 // pred_fallthru
        _
      // Predicated region
      $region57: #{forward.3} parent=47 // pred_check
        %p552 = pneg %p109
      $region58: #{forward.3} parent=47 // pred_check_branch
        %554 = sbr.rel (%p552) target = $region60
      $region59: #{forward.3} parent=47 // pred_region
        %p555 = scmp.lt.s32.totalorder %s32, 1
        %s556 = scalar_select %p555, %s32, 1
        %s557 = smul.addr %s556, 4
        %s558 = smul.addr %s557, 8
        %s559 = scalar_lea.vmem %s2, %s558
      $region60: #{forward.3} parent=47 // pred_fallthru
        _
      // Predicated region
      $region61: #{forward.3} parent=47 // pred_check
        %p560 = pneg %p135
      $region62: #{forward.3} parent=47 // pred_check_branch
        %562 = sbr.rel (%p560) target = $region64
      $region63: #{forward.3} parent=47 // pred_region
        %p563 = scmp.lt.s32.totalorder %s32, 1
        %s564 = scalar_select %p563, %s32, 1
        %s565 = smul.addr %s564, 4
        %s566 = smul.addr %s565, 8
        %s567 = scalar_lea.vmem %s3, %s566
      $region64: #{forward.3} parent=47 // pred_fallthru
        _
      // Predicated region
      $region65: #{forward.3} parent=47 // pred_check
        %p568 = pneg %p161
      $region66: #{forward.3} parent=47 // pred_check_branch
        %570 = sbr.rel (%p568) target = $region68
      $region67: #{forward.3} parent=47 // pred_region
        %p571 = scmp.lt.s32.totalorder %s32, 1
        %s572 = scalar_select %p571, %s32, 1
        %s573 = smul.addr %s572, 4
        %s574 = scalar_lea.vmem %s4, %s573
      $region68: #{forward.3} parent=47 // pred_fallthru
        _
      // Predicated region
      $region69: #{forward.3} parent=47 // pred_check
        %p575 = pneg %p187
      $region70: #{forward.3} parent=47 // pred_check_branch
        %577 = sbr.rel (%p575) target = $region72
      $region71: #{forward.3} parent=47 // pred_region
        %p578 = scmp.lt.s32.totalorder %s33, 2
        %s579 = scalar_select %p578, %s33, 2
        %s580 = smul.addr %s579, 4
        %s581 = smul.addr %s580, 8
        %s582 = scalar_lea.vmem %s5, %s581
      $region72: #{forward.3} parent=47 // pred_fallthru
        _
      // Predicated region
      $region73: #{forward.3} parent=47 // pred_check
        %p583 = pneg %p213
      $region74: #{forward.3} parent=47 // pred_check_branch
        %585 = sbr.rel (%p583) target = $region76
      $region75: #{forward.3} parent=47 // pred_region
        %p586 = scmp.lt.s32.totalorder %s33, 2
        %s587 = scalar_select %p586, %s33, 2
        %s588 = smul.addr %s587, 4
        %s589 = smul.addr %s588, 8
        %s590 = scalar_lea.vmem %s6, %s589
      $region76: #{forward.3} parent=47 // pred_fallthru
        _
      // Predicated region
      $region77: #{forward.3} parent=47 // pred_check
        %p591 = pneg %p241
      $region78: #{forward.3} parent=47 // pred_check_branch
        %593 = sbr.rel (%p591) target = $region80
      $region79: #{forward.3} parent=47 // pred_region
        %p594 = scmp.lt.s32.totalorder %s32, 1
        %s595 = scalar_select %p594, %s32, 1
        %p596 = scmp.lt.s32.totalorder %s33, 2
        %s597 = scalar_select %p596, %s33, 2
        %s598 = smul.addr %s595, 3
        %s599 = sadd.s32 %s597, %s598
        %s600 = scalar_lea.vmem %s7, %s599
      $region80: #{forward.3} parent=47 // pred_fallthru
        _
      // Predicated region
      $region81: #{forward.3} parent=47 // pred_check
        %p601 = pneg %p269
      $region82: #{forward.3} parent=47 // pred_check_branch
        %603 = sbr.rel (%p601) target = $region84
      $region83: #{forward.3} parent=47 // pred_region
        %p604 = scmp.lt.s32.totalorder %s32, 1
        %s605 = scalar_select %p604, %s32, 1
        %p606 = scmp.lt.s32.totalorder %s33, 2
        %s607 = scalar_select %p606, %s33, 2
        %s608 = smul.addr %s605, 3
        %s609 = sadd.s32 %s607, %s608
        %s610 = scalar_lea.vmem %s8, %s609
      $region84: #{forward.3} parent=47 // pred_fallthru
        _
    $region48: #{forward.3} parent=5 // pred_fallthru
      _
    %p611 = scmp.le.s32.totalorder 1, %s25
    %p612 = scmp.lt.s32.totalorder %s25, 7
    %p613 = pnand %p611, %p612
    %p614 = pneg %p613
    // Predicated region
    $region85: #{forward.3} parent=5 // pred_check
      _
    $region86: #{forward.3} parent=5 // pred_check_branch
      %616 = sbr.rel (%p613) target = $region88
    $region87: #{forward.3} parent=5 // pred_region
      %s617 = ssub.s32 %s25, 1
      %p618 = scmp.lt.s32.totalorder %s34, 1
      %s619 = scalar_select %p618, %s34, 1
      %s620 = smul.addr %s619, 4
      %s621 = scalar_lea.vmem %s0, %s620
      %p622 = pneg %p63
      %p623 = pneg %p60
      %p624 = scmp.lt.s32.totalorder %s34, 1
      %s625 = scalar_select %p624, %s34, 1
      %s626 = smul.addr %s625, 4
      %s627 = scalar_lea.vmem %s1, %s626
      %p628 = pneg %p89
      %p629 = pneg %p86
      %p630 = scmp.lt.s32.totalorder %s34, 1
      %s631 = scalar_select %p630, %s34, 1
      %s632 = smul.addr %s631, 4
      %s633 = smul.addr %s632, 8
      %s634 = scalar_lea.vmem %s2, %s633
      %p635 = pneg %p115
      %p636 = pneg %p112
      %p637 = scmp.lt.s32.totalorder %s34, 1
      %s638 = scalar_select %p637, %s34, 1
      %s639 = smul.addr %s638, 4
      %s640 = smul.addr %s639, 8
      %s641 = scalar_lea.vmem %s3, %s640
      %p642 = pneg %p141
      %p643 = pneg %p138
      %p644 = scmp.lt.s32.totalorder %s34, 1
      %s645 = scalar_select %p644, %s34, 1
      %s646 = smul.addr %s645, 4
      %s647 = scalar_lea.vmem %s4, %s646
      %p648 = pneg %p167
      %p649 = pneg %p164
      %p650 = scmp.lt.s32.totalorder %s35, 2
      %s651 = scalar_select %p650, %s35, 2
      %s652 = smul.addr %s651, 4
      %s653 = smul.addr %s652, 8
      %s654 = scalar_lea.vmem %s5, %s653
      %p655 = pneg %p193
      %p656 = pneg %p190
      %p657 = scmp.lt.s32.totalorder %s35, 2
      %s658 = scalar_select %p657, %s35, 2
      %s659 = smul.addr %s658, 4
      %s660 = smul.addr %s659, 8
      %s661 = scalar_lea.vmem %s6, %s660
      %p662 = pneg %p219
      %p663 = pneg %p216
      %p664 = scmp.lt.s32.totalorder %s34, 1
      %s665 = scalar_select %p664, %s34, 1
      %p666 = scmp.lt.s32.totalorder %s35, 2
      %s667 = scalar_select %p666, %s35, 2
      %s668 = smul.addr %s665, 3
      %s669 = sadd.s32 %s667, %s668
      %s670 = scalar_lea.vmem %s7, %s669
      %p671 = pneg %p247
      %p672 = pneg %p244
      %p673 = scmp.lt.s32.totalorder %s34, 1
      %s674 = scalar_select %p673, %s34, 1
      %p675 = scmp.lt.s32.totalorder %s35, 2
      %s676 = scalar_select %p675, %s35, 2
      %s677 = smul.addr %s674, 3
      %s678 = sadd.s32 %s676, %s677
      %s679 = scalar_lea.vmem %s8, %s678
      %p680 = pneg %p275
      %p681 = pneg %p272
      %p682 = pneg %p296
      %p683 = pneg %p293
      %p684 = pneg %p317
      %p685 = pneg %p314
      %p686 = pneg %p338
      %p687 = pneg %p335
      %p688 = pneg %p359
      %p689 = pneg %p356
      %p690 = pneg %p380
      %p691 = pneg %p377
      %p692 = pneg %p401
      %p693 = pneg %p398
      %p694 = pneg %p422
      %p695 = pneg %p419
      %p696 = pneg %p443
      %p697 = pneg %p440
      %p698 = pneg %p469
      %p699 = pneg %p466
      %p700 = scmp.lt.s32.totalorder %s34, 1
      %s701 = scalar_select %p700, %s34, 1
      %s702 = scalar_lea.vmem %s17, %s701
      %p703 = pneg %p495
      %p704 = pneg %p492
      %p705 = scmp.lt.s32.totalorder %s34, 1
      %s706 = scalar_select %p705, %s34, 1
      %s707 = scalar_lea.vmem %s18, %s706
      %p708 = scmp.lt.s32.totalorder %s34, 1
      %s709 = scalar_select %p708, %s34, 1
      %s710 = smul.addr %s709, 4
      %s711 = scalar_lea.vmem %s0, %s710
      %p712 = scmp.lt.s32.totalorder %s34, 1
      %s713 = scalar_select %p712, %s34, 1
      %s714 = smul.addr %s713, 4
      %s715 = scalar_lea.vmem %s1, %s714
      %p716 = scmp.lt.s32.totalorder %s34, 1
      %s717 = scalar_select %p716, %s34, 1
      %s718 = smul.addr %s717, 4
      %s719 = smul.addr %s718, 8
      %s720 = scalar_lea.vmem %s2, %s719
      %p721 = scmp.lt.s32.totalorder %s34, 1
      %s722 = scalar_select %p721, %s34, 1
      %s723 = smul.addr %s722, 4
      %s724 = smul.addr %s723, 8
      %s725 = scalar_lea.vmem %s3, %s724
      %p726 = scmp.lt.s32.totalorder %s34, 1
      %s727 = scalar_select %p726, %s34, 1
      %s728 = smul.addr %s727, 4
      %s729 = scalar_lea.vmem %s4, %s728
      %p730 = scmp.lt.s32.totalorder %s35, 2
      %s731 = scalar_select %p730, %s35, 2
      %s732 = smul.addr %s731, 4
      %s733 = smul.addr %s732, 8
      %s734 = scalar_lea.vmem %s5, %s733
      %p735 = scmp.lt.s32.totalorder %s35, 2
      %s736 = scalar_select %p735, %s35, 2
      %s737 = smul.addr %s736, 4
      %s738 = smul.addr %s737, 8
      %s739 = scalar_lea.vmem %s6, %s738
      %p740 = scmp.lt.s32.totalorder %s34, 1
      %s741 = scalar_select %p740, %s34, 1
      %p742 = scmp.lt.s32.totalorder %s35, 2
      %s743 = scalar_select %p742, %s35, 2
      %s744 = smul.addr %s741, 3
      %s745 = sadd.s32 %s743, %s744
      %s746 = scalar_lea.vmem %s7, %s745
      %p747 = scmp.lt.s32.totalorder %s34, 1
      %s748 = scalar_select %p747, %s34, 1
      %p749 = scmp.lt.s32.totalorder %s35, 2
      %s750 = scalar_select %p749, %s35, 2
      %s751 = smul.addr %s748, 3
      %s752 = sadd.s32 %s750, %s751
      %s753 = scalar_lea.vmem %s8, %s752
      %p754 = scmp.lt.s32.totalorder %s34, 1
      %s755 = scalar_select %p754, %s34, 1
      %s756 = scalar_lea.vmem %s17, %s755
      %p757 = scmp.lt.s32.totalorder %s34, 1
      %s758 = scalar_select %p757, %s34, 1
      %s759 = scalar_lea.vmem %s18, %s758
      %p760 = scmp.eq.s32.totalorder %s35, 0
      // Predicated region
      $region89: #{forward.3} parent=87 // pred_check
        %p761 = pneg %p760
      $region90: #{forward.3} parent=87 // pred_check_branch
        %763 = sbr.rel (%p761) target = $region92
      $region91: #{forward.3} parent=87 // pred_region
        %vm764 = vcmask 256000
        %765 = vst.msk [vmem:[#allocation2] sm:$0x7] %vm764, 0.0
        %766 = vst.msk [vmem:[#allocation3] sm:$0x7] %vm764, 0.0
      $region92: #{forward.3} parent=87 // pred_fallthru
        _
      %v767 = vld [vmem:[%s711] sm:$0xf]
      %v768 = vld [vmem:[%s715] sm:$0xf]
      %v769 = vld [vmem:[%s734] sm:$0xff]
      %v770 = vld [vmem:[%s734 + $0x8] sm:$0xff]
      %v771 = vld [vmem:[%s734 + $0x10] sm:$0xff]
      %v772 = vld [vmem:[%s734 + $0x18] sm:$0xff]
      %vm773 = vcmask 261120
      %v775 = vsel %vm773, %v767, 0
      %777 = vmatpush.msra.mxu0 0.0
      %778 = vmatpush.msra.mxu0 0.0
      %779 = vmatpush.msra.mxu0 0.0
      %780 = vmatpush.msra.mxu0 0.0
      %781 = vmatpush.msra.mxu0 0.0
      %782 = vmatpush.msra.mxu0 0.0
      %783 = vmatpush.msra.mxu0 0.0
      %784 = vmatpush.msra.mxu0 0.0
      %785 = vmatpush.msra.mxu0 0.0
      %786 = vmatpush.msra.mxu0 0.0
      %787 = vmatpush.msra.mxu0 0.0
      %788 = vmatpush.msra.mxu0 0.0
      %789 = vmatpush.msra.mxu0 %v772
      %790 = vmatpush.msra.mxu0 %v771
      %791 = vmatpush.msra.mxu0 %v770
      %792 = vmatpush.msra.mxu0 %v769
      %793 = vmatmul.f32.gmra.mxu0 %v775
      %v794 = vpop.f32.mrf.mxu0
      %v795 = vadd.f32 0.0, %v794
      %796 = vdwg.mxu0
      %v798 = vsel %vm773, %v795, 0
      %v801 = vsel %vm773, %v768, 0
      %803 = vmatpush.xpose.msra.mxu0 0.0
      %804 = vmatpush.xpose.msra.mxu0 0.0
      %805 = vmatpush.xpose.msra.mxu0 0.0
      %806 = vmatpush.xpose.msra.mxu0 0.0
      %807 = vmatpush.xpose.msra.mxu0 0.0
      %808 = vmatpush.xpose.msra.mxu0 0.0
      %809 = vmatpush.xpose.msra.mxu0 0.0
      %810 = vmatpush.xpose.msra.mxu0 0.0
      %811 = vmatpush.xpose.msra.mxu0 0.0
      %812 = vmatpush.xpose.msra.mxu0 0.0
      %813 = vmatpush.xpose.msra.mxu0 0.0
      %814 = vmatpush.xpose.msra.mxu0 0.0
      %815 = vmatpush.xpose.msra.mxu0 0.0
      %816 = vmatpush.xpose.msra.mxu0 0.0
      %817 = vmatpush.xpose.msra.mxu0 0.0
      %818 = vmatpush.xpose.msra.mxu0 %v801
      %819 = vmatmul.f32.gmra.mxu0 %v798
      %v820 = vpop.f32.mrf.mxu0
      %v821 = vadd.f32 0.0, %v820
      %822 = vdwg.mxu0
      %vm823 = vcmask 27648
      %v824 = vsel %vm823, %v821, -inf
      %v825 = vrot.slane %v824, 4
      %v826 = vmax.f32 %v824, %v825
      %v827 = vrot.slane %v826, 2
      %v828 = vmax.f32 %v826, %v827
      %v829 = vrot.slane %v828, 1
      %v830 = vmax.f32 %v828, %v829
      %v831 = vld [vmem:[%s739] sm:$0xff]
      %v832 = vld [vmem:[%s739 + $0x8] sm:$0xff]
      %v833 = vld [vmem:[%s739 + $0x10] sm:$0xff]
      %v834 = vld [vmem:[%s739 + $0x18] sm:$0xff]
      %835 = vmatpush.msra.mxu0 0.0
      %836 = vmatpush.msra.mxu0 0.0
      %837 = vmatpush.msra.mxu0 0.0
      %838 = vmatpush.msra.mxu0 0.0
      %839 = vmatpush.msra.mxu0 0.0
      %840 = vmatpush.msra.mxu0 0.0
      %841 = vmatpush.msra.mxu0 0.0
      %842 = vmatpush.msra.mxu0 0.0
      %843 = vmatpush.msra.mxu0 0.0
      %844 = vmatpush.msra.mxu0 0.0
      %845 = vmatpush.msra.mxu0 0.0
      %846 = vmatpush.msra.mxu0 0.0
      %847 = vmatpush.msra.mxu0 %v834
      %848 = vmatpush.msra.mxu0 %v833
      %849 = vmatpush.msra.mxu0 %v832
      %850 = vmatpush.msra.mxu0 %v831
      %851 = vmatmul.f32.gmra.mxu0 %v801
      %v852 = vpop.f32.mrf.mxu0
      %v853 = vadd.f32 0.0, %v852
      %854 = vdwg.mxu0
      %v856 = vsel %vm773, %v853, 0
      %858 = vmatpush.xpose.msra.mxu0 0.0
      %859 = vmatpush.xpose.msra.mxu0 0.0
      %860 = vmatpush.xpose.msra.mxu0 0.0
      %861 = vmatpush.xpose.msra.mxu0 0.0
      %862 = vmatpush.xpose.msra.mxu0 0.0
      %863 = vmatpush.xpose.msra.mxu0 0.0
      %864 = vmatpush.xpose.msra.mxu0 0.0
      %865 = vmatpush.xpose.msra.mxu0 0.0
      %866 = vmatpush.xpose.msra.mxu0 0.0
      %867 = vmatpush.xpose.msra.mxu0 0.0
      %868 = vmatpush.xpose.msra.mxu0 0.0
      %869 = vmatpush.xpose.msra.mxu0 0.0
      %870 = vmatpush.xpose.msra.mxu0 0.0
      %871 = vmatpush.xpose.msra.mxu0 0.0
      %872 = vmatpush.xpose.msra.mxu0 0.0
      %873 = vmatpush.xpose.msra.mxu0 %v775
      %874 = vmatmul.f32.gmra.mxu0 %v856
      %v875 = vpop.f32.mrf.mxu0
      %v876 = vadd.f32 0.0, %v875
      %877 = vdwg.mxu0
      %v878 = vsel %vm823, %v876, -inf
      %v879 = vrot.slane %v878, 4
      %v880 = vmax.f32 %v878, %v879
      %v881 = vrot.slane %v880, 2
      %v882 = vmax.f32 %v880, %v881
      %v883 = vrot.slane %v882, 1
      %v884 = vmax.f32 %v882, %v883
      %v885 = vld [vmem:[%s746] sm:$0x1]
      %v886 = vadd.f32 %v884, %v885
      %vm887 = vcmask 24576
      %v888 = vsel %vm887, %v886, -inf
      %889 = vmax.xlane.f32.xlu0 %v888
      %v890 = vpop.xlane.xlu0 %889
      %v891 = vlaneseq
      %v892 = vand.u32 %v891, 127
      %vm893 = vcmp.eq.f32.partialorder %v886, %v890
      %v894 = vsel %vm893, %v892, 4
      %v895 = vsel %vm887, %v894, 2147483647
      %v896 = vand.u32 %v895, 65535
      %v897 = vshra.s32 %v895, 16
      %v898 = vcvt.s32.f32 %v896
      %v899 = vcvt.s32.f32 %v897
      %900 = vmin.xlane.f32.xlu0 %v899
      %v901 = vpop.xlane.xlu0 %900
      %vm902 = vcmp.eq.f32.partialorder %v899, %v901
      %v903 = vsel %vm902, %v898, inf
      %904 = vmin.xlane.f32.xlu0 %v903
      %v905 = vpop.xlane.xlu0 %904
      %v906 = vcvt.f32.s32 %v905
      %v907 = vcvt.f32.s32 %v901
      %v908 = vshll.u32 %v907, 16
      %v909 = vadd.s32 %v908, %v906
      %vm910 = vcmp.eq.s32.totalorder %v892, %v909
      %v911 = vsel %vm910, 1, 0
      %v912 = vcvt.s32.f32 %v911
      %v913 = vld [vmem:[%s753] sm:$0x1]
      %v914 = vadd.f32 %v830, %v913
      %v915 = vsel %vm887, %v914, -inf
      %916 = vmax.xlane.f32.xlu0 %v915
      %v917 = vpop.xlane.xlu0 %916
      %vm918 = vcmp.eq.f32.partialorder %v914, %v917
      %v919 = vsel %vm918, %v892, 4
      %v920 = vsel %vm887, %v919, 2147483647
      %v921 = vand.u32 %v920, 65535
      %v922 = vshra.s32 %v920, 16
      %v923 = vcvt.s32.f32 %v921
      %v924 = vcvt.s32.f32 %v922
      %925 = vmin.xlane.f32.xlu0 %v924
      %v926 = vpop.xlane.xlu0 %925
      %vm927 = vcmp.eq.f32.partialorder %v924, %v926
      %v928 = vsel %vm927, %v923, inf
      %929 = vmin.xlane.f32.xlu0 %v928
      %v930 = vpop.xlane.xlu0 %929
      %v931 = vcvt.f32.s32 %v930
      %v932 = vcvt.f32.s32 %v926
      %v933 = vshll.u32 %v932, 16
      %v934 = vadd.s32 %v933, %v931
      %vm935 = vcmp.eq.s32.totalorder %v892, %v934
      %v936 = vsel %vm935, 1, 0
      %v937 = vcvt.s32.f32 %v936
      %vm938 = vcmask 31744
      %v940 = vsel %vm938, %v912, 0
      %vm942 = vcmask 1043456
      %v943 = vsel %vm942, %v767, 0
      %945 = vmatpush.msra.mxu0 0.0
      %946 = vmatpush.msra.mxu0 0.0
      %947 = vmatpush.msra.mxu0 0.0
      %948 = vmatpush.msra.mxu0 0.0
      %949 = vmatpush.msra.mxu0 0.0
      %950 = vmatpush.msra.mxu0 0.0
      %951 = vmatpush.msra.mxu0 0.0
      %952 = vmatpush.msra.mxu0 0.0
      %953 = vmatpush.msra.mxu0 0.0
      %954 = vmatpush.msra.mxu0 0.0
      %955 = vmatpush.msra.mxu0 0.0
      %956 = vmatpush.msra.mxu0 0.0
      %957 = vmatpush.msra.mxu0 0.0
      %958 = vmatpush.msra.mxu0 0.0
      %959 = vmatpush.msra.mxu0 0.0
      %960 = vmatpush.msra.mxu0 %v943
      %961 = vmatmul.f32.gmra.mxu0 %v940
      %v962 = vpop.f32.mrf.mxu0
      %v963 = vadd.f32 0.0, %v962
      %964 = vdwg.mxu0
      %v966 = vsel %vm938, %v937, 0
      %v968 = vsel %vm942, %v768, 0
      %970 = vmatpush.msra.mxu0 0.0
      %971 = vmatpush.msra.mxu0 0.0
      %972 = vmatpush.msra.mxu0 0.0
      %973 = vmatpush.msra.mxu0 0.0
      %974 = vmatpush.msra.mxu0 0.0
      %975 = vmatpush.msra.mxu0 0.0
      %976 = vmatpush.msra.mxu0 0.0
      %977 = vmatpush.msra.mxu0 0.0
      %978 = vmatpush.msra.mxu0 0.0
      %979 = vmatpush.msra.mxu0 0.0
      %980 = vmatpush.msra.mxu0 0.0
      %981 = vmatpush.msra.mxu0 0.0
      %982 = vmatpush.msra.mxu0 0.0
      %983 = vmatpush.msra.mxu0 0.0
      %984 = vmatpush.msra.mxu0 0.0
      %985 = vmatpush.msra.mxu0 %v968
      %986 = vmatmul.f32.gmra.mxu0 %v966
      %v987 = vpop.f32.mrf.mxu0
      %v988 = vadd.f32 0.0, %v987
      %989 = vdwg.mxu0
      %v990 = vlaneseq
      %v991 = vshrl.u32 %v990, 7
      %v992 = vmul.u32 %v909, 8
      %v993 = vperm.slane %v992, 0
      %v994 = vadd.s32 %v993, %v991
      %vm995 = vcmp.eq.s32.totalorder %v892, %v994
      %v996 = vsel %vm995, 1, 0
      %v997 = vcvt.s32.f32 %v996
      %v998 = vld [vmem:[%s720] sm:$0xff]
      %v999 = vld [vmem:[%s720 + $0x8] sm:$0xff]
      %v1000 = vld [vmem:[%s720 + $0x10] sm:$0xff]
      %v1001 = vld [vmem:[%s720 + $0x18] sm:$0xff]
      %v1003 = vsel %vm773, %v997, 0
      %1005 = vmatpush.msra.mxu0 0.0
      %1006 = vmatpush.msra.mxu0 0.0
      %1007 = vmatpush.msra.mxu0 0.0
      %1008 = vmatpush.msra.mxu0 0.0
      %1009 = vmatpush.msra.mxu0 0.0
      %1010 = vmatpush.msra.mxu0 0.0
      %1011 = vmatpush.msra.mxu0 0.0
      %1012 = vmatpush.msra.mxu0 0.0
      %1013 = vmatpush.msra.mxu0 0.0
      %1014 = vmatpush.msra.mxu0 0.0
      %1015 = vmatpush.msra.mxu0 0.0
      %1016 = vmatpush.msra.mxu0 0.0
      %1017 = vmatpush.msra.mxu0 %v1001
      %1018 = vmatpush.msra.mxu0 %v1000
      %1019 = vmatpush.msra.mxu0 %v999
      %1020 = vmatpush.msra.mxu0 %v998
      %1021 = vmatmul.f32.gmra.mxu0 %v1003
      %v1022 = vpop.f32.mrf.mxu0
      %v1023 = vadd.f32 0.0, %v1022
      %1024 = vdwg.mxu0
      %v1025 = vmul.u32 %v934, 8
      %v1026 = vperm.slane %v1025, 0
      %v1027 = vadd.s32 %v1026, %v991
      %vm1028 = vcmp.eq.s32.totalorder %v892, %v1027
      %v1029 = vsel %vm1028, 1, 0
      %v1030 = vcvt.s32.f32 %v1029
      %v1031 = vld [vmem:[%s725] sm:$0xff]
      %v1032 = vld [vmem:[%s725 + $0x8] sm:$0xff]
      %v1033 = vld [vmem:[%s725 + $0x10] sm:$0xff]
      %v1034 = vld [vmem:[%s725 + $0x18] sm:$0xff]
      %v1036 = vsel %vm773, %v1030, 0
      %1038 = vmatpush.msra.mxu0 0.0
      %1039 = vmatpush.msra.mxu0 0.0
      %1040 = vmatpush.msra.mxu0 0.0
      %1041 = vmatpush.msra.mxu0 0.0
      %1042 = vmatpush.msra.mxu0 0.0
      %1043 = vmatpush.msra.mxu0 0.0
      %1044 = vmatpush.msra.mxu0 0.0
      %1045 = vmatpush.msra.mxu0 0.0
      %1046 = vmatpush.msra.mxu0 0.0
      %1047 = vmatpush.msra.mxu0 0.0
      %1048 = vmatpush.msra.mxu0 0.0
      %1049 = vmatpush.msra.mxu0 0.0
      %1050 = vmatpush.msra.mxu0 %v1034
      %1051 = vmatpush.msra.mxu0 %v1033
      %1052 = vmatpush.msra.mxu0 %v1032
      %1053 = vmatpush.msra.mxu0 %v1031
      %1054 = vmatmul.f32.gmra.mxu0 %v1036
      %v1055 = vpop.f32.mrf.mxu0
      %v1056 = vadd.f32 0.0, %v1055
      %1057 = vdwg.mxu0
      %v1058 = vld [vmem:[%s729] sm:$0x7]
      %v1059 = vld [vmem:[#allocation2] sm:$0x7]
      %v1060 = vperm.slane %v963, 0
      %1062 = vrot.lane.b32.xlu0 %v1060, 32
      %v1063 = vpop.permute.xlu0 %1062
      %v1065 = vsel %vm773, %v1058, %v1063
      %v1066 = vld [vmem:[%s9] sm:$0xff]
      %v1067 = vld [vmem:[%s9 + $0x8] sm:$0xff]
      %v1068 = vld [vmem:[%s9 + $0x10] sm:$0xff]
      %v1069 = vld [vmem:[%s9 + $0x18] sm:$0xff]
      %v1070 = vld [vmem:[%s9 + $0x20] sm:$0xff]
      %v1071 = vld [vmem:[%s9 + $0x28] sm:$0xff]
      %v1072 = vld [vmem:[%s9 + $0x30] sm:$0xff]
      %v1073 = vld [vmem:[%s9 + $0x38] sm:$0xff]
      %v1074 = vld [vmem:[%s10] sm:$0x1]
      %v1076 = vperm.slane %v1074, 0
      %vm1078 = vcmask 523264
      %v1080 = vsel %vm1078, %v1065, 0
      %1082 = vmatpush.msra.mxu0 0.0
      %1083 = vmatpush.msra.mxu0 0.0
      %1084 = vmatpush.msra.mxu0 0.0
      %1085 = vmatpush.msra.mxu0 0.0
      %1086 = vmatpush.msra.mxu0 0.0
      %1087 = vmatpush.msra.mxu0 0.0
      %1088 = vmatpush.msra.mxu0 0.0
      %1089 = vmatpush.msra.mxu0 0.0
      %1090 = vmatpush.msra.mxu0 %v1073
      %1091 = vmatpush.msra.mxu0 %v1072
      %1092 = vmatpush.msra.mxu0 %v1071
      %1093 = vmatpush.msra.mxu0 %v1070
      %1094 = vmatpush.msra.mxu0 %v1069
      %1095 = vmatpush.msra.mxu0 %v1068
      %1096 = vmatpush.msra.mxu0 %v1067
      %1097 = vmatpush.msra.mxu0 %v1066
      %1098 = vmatmul.f32.gmra.mxu0 %v1080
      %v1099 = vpop.f32.mrf.mxu0
      %v1100 = vadd.f32 %v1076, %v1099
      %1101 = vdwg.mxu0
      %v1103 = vsel %vm773, %v1100, 0
      %v1106 = vsel %vm773, %v1023, 0
      %1108 = vmatpush.xpose.msra.mxu0 0.0
      %1109 = vmatpush.xpose.msra.mxu0 0.0
      %1110 = vmatpush.xpose.msra.mxu0 0.0
      %1111 = vmatpush.xpose.msra.mxu0 0.0
      %1112 = vmatpush.xpose.msra.mxu0 0.0
      %1113 = vmatpush.xpose.msra.mxu0 0.0
      %1114 = vmatpush.xpose.msra.mxu0 0.0
      %1115 = vmatpush.xpose.msra.mxu0 0.0
      %1116 = vmatpush.xpose.msra.mxu0 0.0
      %1117 = vmatpush.xpose.msra.mxu0 0.0
      %1118 = vmatpush.xpose.msra.mxu0 0.0
      %1119 = vmatpush.xpose.msra.mxu0 0.0
      %1120 = vmatpush.xpose.msra.mxu0 0.0
      %1121 = vmatpush.xpose.msra.mxu0 0.0
      %1122 = vmatpush.xpose.msra.mxu0 0.0
      %1123 = vmatpush.xpose.msra.mxu0 %v1106
      %1124 = vmatmul.f32.gmra.mxu0 %v1103
      %v1125 = vpop.f32.mrf.mxu0
      %v1126 = vadd.f32 0.0, %v1125
      %1127 = vdwg.mxu0
      %v1128 = vmul.f32 %v1126, 2.0
      %vm1129 = vcmask 59392
      %v1130 = vsel %vm1129, %v1128, -inf
      %1131 = vmax.xlane.f32.xlu0 %v1130
      %v1132 = vpop.xlane.xlu0 %1131
      %v1133 = vsub.f32 %v1128, %v1132
      %v1134 = vmul.f32 %v1133, 1.442695
      %v1135 = vpow.pop %v1134
      %v1136 = vsel %vm1129, %v1135, 0.0
      %1137 = vadd.xlane.f32.xlu0 %v1136
      %v1138 = vpop.xlane.xlu0 %1137
      %v1139 = vrcp.pop %v1138
      %v1140 = vmul.f32 %v1135, %v1139
      %vm1141 = vcmask 64512
      %v1143 = vsel %vm1141, %v1140, 0
      %1145 = vmatpush.msra.mxu0 0.0
      %1146 = vmatpush.msra.mxu0 0.0
      %1147 = vmatpush.msra.mxu0 0.0
      %1148 = vmatpush.msra.mxu0 0.0
      %1149 = vmatpush.msra.mxu0 0.0
      %1150 = vmatpush.msra.mxu0 0.0
      %1151 = vmatpush.msra.mxu0 0.0
      %1152 = vmatpush.msra.mxu0 0.0
      %1153 = vmatpush.msra.mxu0 0.0
      %1154 = vmatpush.msra.mxu0 0.0
      %1155 = vmatpush.msra.mxu0 0.0
      %1156 = vmatpush.msra.mxu0 0.0
      %1157 = vmatpush.msra.mxu0 0.0
      %1158 = vmatpush.msra.mxu0 0.0
      %1159 = vmatpush.msra.mxu0 0.0
      %1160 = vmatpush.msra.mxu0 %v1023
      %1161 = vmatmul.f32.gmra.mxu0 %v1143
      %v1162 = vpop.f32.mrf.mxu0
      %v1163 = vadd.f32 0.0, %v1162
      %1164 = vdwg.mxu0
      %v1165 = vadd.f32 %v1059, %v1163
      %vm1166 = vcmask 256000
      %1167 = vst.msk [vmem:[#allocation2] sm:$0x7] %vm1166, %v1165
      %v1168 = vld [vmem:[#allocation3] sm:$0x7]
      %v1169 = vperm.slane %v988, 0
      %1171 = vrot.lane.b32.xlu0 %v1169, 32
      %v1172 = vpop.permute.xlu0 %1171
      %v1174 = vsel %vm773, %v1058, %v1172
      %v1175 = vld [vmem:[%s11] sm:$0xff]
      %v1176 = vld [vmem:[%s11 + $0x8] sm:$0xff]
      %v1177 = vld [vmem:[%s11 + $0x10] sm:$0xff]
      %v1178 = vld [vmem:[%s11 + $0x18] sm:$0xff]
      %v1179 = vld [vmem:[%s11 + $0x20] sm:$0xff]
      %v1180 = vld [vmem:[%s11 + $0x28] sm:$0xff]
      %v1181 = vld [vmem:[%s11 + $0x30] sm:$0xff]
      %v1182 = vld [vmem:[%s11 + $0x38] sm:$0xff]
      %v1183 = vld [vmem:[%s12] sm:$0x1]
      %v1185 = vperm.slane %v1183, 0
      %v1188 = vsel %vm1078, %v1174, 0
      %1190 = vmatpush.msra.mxu0 0.0
      %1191 = vmatpush.msra.mxu0 0.0
      %1192 = vmatpush.msra.mxu0 0.0
      %1193 = vmatpush.msra.mxu0 0.0
      %1194 = vmatpush.msra.mxu0 0.0
      %1195 = vmatpush.msra.mxu0 0.0
      %1196 = vmatpush.msra.mxu0 0.0
      %1197 = vmatpush.msra.mxu0 0.0
      %1198 = vmatpush.msra.mxu0 %v1182
      %1199 = vmatpush.msra.mxu0 %v1181
      %1200 = vmatpush.msra.mxu0 %v1180
      %1201 = vmatpush.msra.mxu0 %v1179
      %1202 = vmatpush.msra.mxu0 %v1178
      %1203 = vmatpush.msra.mxu0 %v1177
      %1204 = vmatpush.msra.mxu0 %v1176
      %1205 = vmatpush.msra.mxu0 %v1175
      %1206 = vmatmul.f32.gmra.mxu0 %v1188
      %v1207 = vpop.f32.mrf.mxu0
      %v1208 = vadd.f32 %v1185, %v1207
      %1209 = vdwg.mxu0
      %v1211 = vsel %vm773, %v1208, 0
      %v1214 = vsel %vm773, %v1056, 0
      %1216 = vmatpush.xpose.msra.mxu0 0.0
      %1217 = vmatpush.xpose.msra.mxu0 0.0
      %1218 = vmatpush.xpose.msra.mxu0 0.0
      %1219 = vmatpush.xpose.msra.mxu0 0.0
      %1220 = vmatpush.xpose.msra.mxu0 0.0
      %1221 = vmatpush.xpose.msra.mxu0 0.0
      %1222 = vmatpush.xpose.msra.mxu0 0.0
      %1223 = vmatpush.xpose.msra.mxu0 0.0
      %1224 = vmatpush.xpose.msra.mxu0 0.0
      %1225 = vmatpush.xpose.msra.mxu0 0.0
      %1226 = vmatpush.xpose.msra.mxu0 0.0
      %1227 = vmatpush.xpose.msra.mxu0 0.0
      %1228 = vmatpush.xpose.msra.mxu0 0.0
      %1229 = vmatpush.xpose.msra.mxu0 0.0
      %1230 = vmatpush.xpose.msra.mxu0 0.0
      %1231 = vmatpush.xpose.msra.mxu0 %v1214
      %1232 = vmatmul.f32.gmra.mxu0 %v1211
      %v1233 = vpop.f32.mrf.mxu0
      %v1234 = vadd.f32 0.0, %v1233
      %1235 = vdwg.mxu0
      %v1236 = vmul.f32 %v1234, 2.0
      %v1237 = vsel %vm1129, %v1236, -inf
      %1238 = vmax.xlane.f32.xlu0 %v1237
      %v1239 = vpop.xlane.xlu0 %1238
      %v1240 = vsub.f32 %v1236, %v1239
      %v1241 = vmul.f32 %v1240, 1.442695
      %v1242 = vpow.pop %v1241
      %v1243 = vsel %vm1129, %v1242, 0.0
      %1244 = vadd.xlane.f32.xlu0 %v1243
      %v1245 = vpop.xlane.xlu0 %1244
      %v1246 = vrcp.pop %v1245
      %v1247 = vmul.f32 %v1242, %v1246
      %v1249 = vsel %vm1141, %v1247, 0
      %1251 = vmatpush.msra.mxu0 0.0
      %1252 = vmatpush.msra.mxu0 0.0
      %1253 = vmatpush.msra.mxu0 0.0
      %1254 = vmatpush.msra.mxu0 0.0
      %1255 = vmatpush.msra.mxu0 0.0
      %1256 = vmatpush.msra.mxu0 0.0
      %1257 = vmatpush.msra.mxu0 0.0
      %1258 = vmatpush.msra.mxu0 0.0
      %1259 = vmatpush.msra.mxu0 0.0
      %1260 = vmatpush.msra.mxu0 0.0
      %1261 = vmatpush.msra.mxu0 0.0
      %1262 = vmatpush.msra.mxu0 0.0
      %1263 = vmatpush.msra.mxu0 0.0
      %1264 = vmatpush.msra.mxu0 0.0
      %1265 = vmatpush.msra.mxu0 0.0
      %1266 = vmatpush.msra.mxu0 %v1056
      %1267 = vmatmul.f32.gmra.mxu0 %v1249
      %v1268 = vpop.f32.mrf.mxu0
      %v1269 = vadd.f32 0.0, %v1268
      %1270 = vdwg.mxu0
      %v1271 = vadd.f32 %v1168, %v1269
      %1272 = vst.msk [vmem:[#allocation3] sm:$0x7] %vm1166, %v1271
      %p1273 = scmp.eq.s32.totalorder %s35, 2
      // Predicated region
      $region93: #{forward.3} parent=87 // pred_check
        %p1274 = pneg %p1273
      $region94: #{forward.3} parent=87 // pred_check_branch
        %1276 = sbr.rel (%p1274) target = $region96
      $region95: #{forward.3} parent=87 // pred_region
        %v1277 = vld [vmem:[#allocation2] sm:$0x7]
        %v1278 = vld [vmem:[#allocation3] sm:$0x7]
        %v1279 = vld [vmem:[%s14] sm:$0x1]
        %v1280 = vld [vmem:[%s16] sm:$0x1]
        %v1281 = vld [vmem:[%s13] sm:$0xff]
        %v1282 = vld [vmem:[%s13 + $0x8] sm:$0xff]
        %v1283 = vld [vmem:[%s13 + $0x10] sm:$0xff]
        %v1284 = vld [vmem:[%s13 + $0x18] sm:$0xff]
        %v1286 = vsel %vm773, %v1277, 0
        %1288 = vmatpush.msra.mxu0 0.0
        %1289 = vmatpush.msra.mxu0 0.0
        %1290 = vmatpush.msra.mxu0 0.0
        %1291 = vmatpush.msra.mxu0 0.0
        %1292 = vmatpush.msra.mxu0 0.0
        %1293 = vmatpush.msra.mxu0 0.0
        %1294 = vmatpush.msra.mxu0 0.0
        %1295 = vmatpush.msra.mxu0 0.0
        %1296 = vmatpush.msra.mxu0 0.0
        %1297 = vmatpush.msra.mxu0 0.0
        %1298 = vmatpush.msra.mxu0 0.0
        %1299 = vmatpush.msra.mxu0 0.0
        %1300 = vmatpush.msra.mxu0 %v1284
        %1301 = vmatpush.msra.mxu0 %v1283
        %1302 = vmatpush.msra.mxu0 %v1282
        %1303 = vmatpush.msra.mxu0 %v1281
        %1304 = vmatmul.f32.gmra.mxu0 %v1286
        %v1305 = vpop.f32.mrf.mxu0
        %v1306 = vadd.f32 0.0, %v1305
        %1307 = vdwg.mxu0
        %v1308 = vadd.f32 %v1279, %v1306
        %v1309 = vld [vmem:[%s15] sm:$0xff]
        %v1310 = vld [vmem:[%s15 + $0x8] sm:$0xff]
        %v1311 = vld [vmem:[%s15 + $0x10] sm:$0xff]
        %v1312 = vld [vmem:[%s15 + $0x18] sm:$0xff]
        %v1314 = vsel %vm773, %v1278, 0
        %1316 = vmatpush.msra.mxu0 0.0
        %1317 = vmatpush.msra.mxu0 0.0
        %1318 = vmatpush.msra.mxu0 0.0
        %1319 = vmatpush.msra.mxu0 0.0
        %1320 = vmatpush.msra.mxu0 0.0
        %1321 = vmatpush.msra.mxu0 0.0
        %1322 = vmatpush.msra.mxu0 0.0
        %1323 = vmatpush.msra.mxu0 0.0
        %1324 = vmatpush.msra.mxu0 0.0
        %1325 = vmatpush.msra.mxu0 0.0
        %1326 = vmatpush.msra.mxu0 0.0
        %1327 = vmatpush.msra.mxu0 0.0
        %1328 = vmatpush.msra.mxu0 %v1312
        %1329 = vmatpush.msra.mxu0 %v1311
        %1330 = vmatpush.msra.mxu0 %v1310
        %1331 = vmatpush.msra.mxu0 %v1309
        %1332 = vmatmul.f32.gmra.mxu0 %v1314
        %v1333 = vpop.f32.mrf.mxu0
        %v1334 = vadd.f32 0.0, %v1333
        %1335 = vdwg.mxu0
        %v1336 = vadd.f32 %v1280, %v1334
        %s1337 = scalar_lea.vmem %s13, 32
        %v1338 = vld [vmem:[%s1337] sm:$0xff]
        %v1339 = vld [vmem:[%s1337 + $0x8] sm:$0xff]
        %v1340 = vld [vmem:[%s1337 + $0x10] sm:$0xff]
        %v1341 = vld [vmem:[%s1337 + $0x18] sm:$0xff]
        %v1342 = vrot.slane %v1277, 1
        %v1343 = vsel %vm773, %v1342, 0
        %1345 = vmatpush.msra.mxu0 0.0
        %1346 = vmatpush.msra.mxu0 0.0
        %1347 = vmatpush.msra.mxu0 0.0
        %1348 = vmatpush.msra.mxu0 0.0
        %1349 = vmatpush.msra.mxu0 0.0
        %1350 = vmatpush.msra.mxu0 0.0
        %1351 = vmatpush.msra.mxu0 0.0
        %1352 = vmatpush.msra.mxu0 0.0
        %1353 = vmatpush.msra.mxu0 0.0
        %1354 = vmatpush.msra.mxu0 0.0
        %1355 = vmatpush.msra.mxu0 0.0
        %1356 = vmatpush.msra.mxu0 0.0
        %1357 = vmatpush.msra.mxu0 %v1341
        %1358 = vmatpush.msra.mxu0 %v1340
        %1359 = vmatpush.msra.mxu0 %v1339
        %1360 = vmatpush.msra.mxu0 %v1338
        %1361 = vmatmul.f32.gmra.mxu0 %v1343
        %v1362 = vpop.f32.mrf.mxu0
        %v1363 = vadd.f32 0.0, %v1362
        %1364 = vdwg.mxu0
        %v1365 = vadd.f32 %v1308, %v1363
        %s1366 = scalar_lea.vmem %s15, 32
        %v1367 = vld [vmem:[%s1366] sm:$0xff]
        %v1368 = vld [vmem:[%s1366 + $0x8] sm:$0xff]
        %v1369 = vld [vmem:[%s1366 + $0x10] sm:$0xff]
        %v1370 = vld [vmem:[%s1366 + $0x18] sm:$0xff]
        %v1371 = vrot.slane %v1278, 1
        %v1372 = vsel %vm773, %v1371, 0
        %1374 = vmatpush.msra.mxu0 0.0
        %1375 = vmatpush.msra.mxu0 0.0
        %1376 = vmatpush.msra.mxu0 0.0
        %1377 = vmatpush.msra.mxu0 0.0
        %1378 = vmatpush.msra.mxu0 0.0
        %1379 = vmatpush.msra.mxu0 0.0
        %1380 = vmatpush.msra.mxu0 0.0
        %1381 = vmatpush.msra.mxu0 0.0
        %1382 = vmatpush.msra.mxu0 0.0
        %1383 = vmatpush.msra.mxu0 0.0
        %1384 = vmatpush.msra.mxu0 0.0
        %1385 = vmatpush.msra.mxu0 0.0
        %1386 = vmatpush.msra.mxu0 %v1370
        %1387 = vmatpush.msra.mxu0 %v1369
        %1388 = vmatpush.msra.mxu0 %v1368
        %1389 = vmatpush.msra.mxu0 %v1367
        %1390 = vmatmul.f32.gmra.mxu0 %v1372
        %v1391 = vpop.f32.mrf.mxu0
        %v1392 = vadd.f32 0.0, %v1391
        %1393 = vdwg.mxu0
        %v1394 = vadd.f32 %v1336, %v1392
        %s1395 = scalar_lea.vmem %s13, 64
        %v1396 = vld [vmem:[%s1395] sm:$0xff]
        %v1397 = vld [vmem:[%s1395 + $0x8] sm:$0xff]
        %v1398 = vld [vmem:[%s1395 + $0x10] sm:$0xff]
        %v1399 = vld [vmem:[%s1395 + $0x18] sm:$0xff]
        %v1400 = vrot.slane %v1277, 2
        %v1401 = vsel %vm773, %v1400, 0
        %1403 = vmatpush.msra.mxu0 0.0
        %1404 = vmatpush.msra.mxu0 0.0
        %1405 = vmatpush.msra.mxu0 0.0
        %1406 = vmatpush.msra.mxu0 0.0
        %1407 = vmatpush.msra.mxu0 0.0
        %1408 = vmatpush.msra.mxu0 0.0
        %1409 = vmatpush.msra.mxu0 0.0
        %1410 = vmatpush.msra.mxu0 0.0
        %1411 = vmatpush.msra.mxu0 0.0
        %1412 = vmatpush.msra.mxu0 0.0
        %1413 = vmatpush.msra.mxu0 0.0
        %1414 = vmatpush.msra.mxu0 0.0
        %1415 = vmatpush.msra.mxu0 %v1399
        %1416 = vmatpush.msra.mxu0 %v1398
        %1417 = vmatpush.msra.mxu0 %v1397
        %1418 = vmatpush.msra.mxu0 %v1396
        %1419 = vmatmul.f32.gmra.mxu0 %v1401
        %v1420 = vpop.f32.mrf.mxu0
        %v1421 = vadd.f32 0.0, %v1420
        %1422 = vdwg.mxu0
        %v1423 = vadd.f32 %v1365, %v1421
        %s1424 = scalar_lea.vmem %s15, 64
        %v1425 = vld [vmem:[%s1424] sm:$0xff]
        %v1426 = vld [vmem:[%s1424 + $0x8] sm:$0xff]
        %v1427 = vld [vmem:[%s1424 + $0x10] sm:$0xff]
        %v1428 = vld [vmem:[%s1424 + $0x18] sm:$0xff]
        %v1429 = vrot.slane %v1278, 2
        %v1430 = vsel %vm773, %v1429, 0
        %1432 = vmatpush.msra.mxu0 0.0
        %1433 = vmatpush.msra.mxu0 0.0
        %1434 = vmatpush.msra.mxu0 0.0
        %1435 = vmatpush.msra.mxu0 0.0
        %1436 = vmatpush.msra.mxu0 0.0
        %1437 = vmatpush.msra.mxu0 0.0
        %1438 = vmatpush.msra.mxu0 0.0
        %1439 = vmatpush.msra.mxu0 0.0
        %1440 = vmatpush.msra.mxu0 0.0
        %1441 = vmatpush.msra.mxu0 0.0
        %1442 = vmatpush.msra.mxu0 0.0
        %1443 = vmatpush.msra.mxu0 0.0
        %1444 = vmatpush.msra.mxu0 %v1428
        %1445 = vmatpush.msra.mxu0 %v1427
        %1446 = vmatpush.msra.mxu0 %v1426
        %1447 = vmatpush.msra.mxu0 %v1425
        %1448 = vmatmul.f32.gmra.mxu0 %v1430
        %v1449 = vpop.f32.mrf.mxu0
        %v1450 = vadd.f32 0.0, %v1449
        %1451 = vdwg.mxu0
        %v1452 = vadd.f32 %v1394, %v1450
        %vm1453 = vcmask 122880
        %1454 = vst.msk [vmem:[%s756] sm:$0x1] %vm1453, %v1423
        %1455 = vst.msk [vmem:[%s759] sm:$0x1] %vm1453, %v1452
      $region96: #{forward.3} parent=87 // pred_fallthru
        _
      %p1456 = scmp.lt.s32.totalorder %s34, 1
      %s1457 = scalar_select %p1456, %s34, 1
      %s1458 = scalar_lea.vmem %s17, %s1457
      %p1459 = scmp.lt.s32.totalorder %s34, 1
      %s1460 = scalar_select %p1459, %s34, 1
      %s1461 = scalar_lea.vmem %s18, %s1460
      // Predicated region
      $region97: #{forward.3} parent=87 // pred_check
        %p1462 = pneg %p466
      $region98: #{forward.3} parent=87 // pred_check_branch
        %1464 = sbr.rel (%p1462) target = $region100
      $region99: #{forward.3} parent=87 // pred_region
        _
      $region100: #{forward.3} parent=87 // pred_fallthru
        _
      // Predicated region
      $region101: #{forward.3} parent=87 // pred_check
        %p1465 = pneg %p492
      $region102: #{forward.3} parent=87 // pred_check_branch
        %1467 = sbr.rel (%p1465) target = $region104
      $region103: #{forward.3} parent=87 // pred_region
        _
      $region104: #{forward.3} parent=87 // pred_fallthru
        _
    $region88: #{forward.3} parent=5 // pred_fallthru
      _
    %p1468 = scmp.le.s32.totalorder 2, %s25
    // Predicated region
    $region105: #{forward.3} parent=5 // pred_check
      %p1469 = pneg %p1468
    $region106: #{forward.3} parent=5 // pred_check_branch
      %1471 = sbr.rel (%p1469) target = $region108
    $region107: #{forward.3} parent=5 // pred_region
      %s1472 = ssub.s32 %s25, 2
      // Predicated region
      $region109: #{forward.3} parent=107 // pred_check
        %p1473 = pneg %p472
      $region110: #{forward.3} parent=107 // pred_check_branch
        %1475 = sbr.rel (%p1473) target = $region112
      $region111: #{forward.3} parent=107 // pred_region
        %p1476 = scmp.lt.s32.totalorder %s36, 1
        %s1477 = scalar_select %p1476, %s36, 1
        %s1478 = scalar_lea.vmem %s17, %s1477
      $region112: #{forward.3} parent=107 // pred_fallthru
        _
      // Predicated region
      $region113: #{forward.3} parent=107 // pred_check
        %p1479 = pneg %p498
      $region114: #{forward.3} parent=107 // pred_check_branch
        %1481 = sbr.rel (%p1479) target = $region116
      $region115: #{forward.3} parent=107 // pred_region
        %p1482 = scmp.lt.s32.totalorder %s36, 1
        %s1483 = scalar_select %p1482, %s36, 1
        %s1484 = scalar_lea.vmem %s18, %s1483
      $region116: #{forward.3} parent=107 // pred_fallthru
        _
    $region108: #{forward.3} parent=5 // pred_fallthru
      _
  $region6: #{forward.3} parent=0 // loop_footer
    %s29 = sadd.s32 1, %s25
  $region7: #{forward.3} parent=0 // loop_footer_branch
    %24 = sbr.rel target = $region3
  $region8: #{forward.3} parent=0 // loop_exit
    _

</llo_original>
